<compile_context>
chip_gen: v6e
topology: v6e:2x2x1
jax: 0.10.0
libtpu: 0.0.40
codegen_flags: <defaults>
</compile_context>

<pallas_src>
from functools import partial

import jax
import jax.numpy as jnp
from jax import lax
from jax.experimental import pallas as pl
from jax.experimental.pallas import tpu as pltpu

# ---- module constants (from the PyTorch __init__) ----
CIN, COUT = 196, 48
CIN_PAD = 256                       # zero-padded K for lane/MXU alignment
CLAMP_MIN, CLAMP_MAX = 0.002, 0.003

# ---- small demo shapes (even spatial dims; maxpool k=3 s=2 p=1) ----
N, H, W = 2, 16, 16
HOUT = (H + 2 - 3) // 2 + 1
WOUT = (W + 2 - 3) // 2 + 1


def _fused_kernel(x_ref, w_ref, b_ref, o_ref, ybuf):
    # x_ref : (BB*H*W, CIN_PAD)  block of BB images, channels-last, spatially flattened
    # w_ref : (CIN_PAD, COUT)    1x1 conv weight as a matmul matrix (zero-padded rows)
    # b_ref : (1, COUT)          conv bias
    # o_ref : (BB, HOUT, 1, WOUT*COUT)   lane-dense pooled+clamped output
    # ybuf  : VMEM scratch (BB, H+1, W+1, COUT); row 0 / col 0 are the maxpool padding
    BB = o_ref.shape[0]

    # 1x1 conv == channel matmul (MXU), then bias + ReLU (VPU).
    y = jnp.dot(x_ref[...], w_ref[...], preferred_element_type=jnp.float32)
    y = jnp.maximum(y + b_ref[...], 0.0)                       # (BB*H*W, COUT), >= 0

    # Stage into the padded pooling buffer.  Zero padding == -inf padding here because the
    # activations are post-ReLU (>= 0) and the result is clamped to >= 0.002 afterwards.
    ybuf[:, 0:1, :, :] = jnp.zeros((BB, 1, W + 1, COUT), jnp.float32)   # top pad row
    ybuf[:, :, 0:1, :] = jnp.zeros((BB, H + 1, 1, COUT), jnp.float32)   # left pad col
    # single store; the 256 -> (16, 16) leading-dim split is layout-trivial (16 % 8 == 0)
    ybuf[:, 1:H + 1, 1:W + 1, :] = y.reshape(BB, H, W, COUT)

    # Max over the 3 rows of every window, vectorized over all output rows.
    # Output row i needs ybuf rows {2i, 2i+1, 2i+2}; selected with leading-dim
    # reshapes/slices only (layout-trivial).
    ylo = ybuf[:, 0:H, :, :].reshape(BB, HOUT, 2, W + 1, COUT)          # rows 0..15
    yhi = ybuf[:, 1:H + 1, :, :].reshape(BB, HOUT, 2, W + 1, COUT)      # rows 1..16
    rowm = jnp.maximum(jnp.maximum(ylo[:, :, 0], ylo[:, :, 1]), yhi[:, :, 1])
    # rowm: (BB, HOUT, W+1, COUT)

    # Max over the 3 columns of every window; build the full output block in registers
    # (lane-concat of the 8 column maxima -> lane-dense 384-wide rows), clamp once,
    # and issue a single store.
    cols = []
    for j in range(WOUT):
        w0 = rowm[:, :, 2 * j:2 * j + 1, :]
        w1 = rowm[:, :, 2 * j + 1:2 * j + 2, :]
        w2 = rowm[:, :, 2 * j + 2:2 * j + 3, :]
        cols.append(jnp.maximum(jnp.maximum(w0, w1), w2))               # (BB, HOUT, 1, COUT)
    pooled = jnp.concatenate(cols, axis=3)                              # (BB, HOUT, 1, WOUT*COUT)
    o_ref[...] = jnp.minimum(jnp.maximum(pooled, CLAMP_MIN), CLAMP_MAX)


def _default_images_per_step(n):
    """v7x (2 TensorCores/chip): keep images on the parallel grid axis.
    v5e/v6e (1 TensorCore): merge the whole (small) batch into one grid step."""
    kind = ""
    try:
        kind = jax.devices()[0].device_kind.lower()
    except Exception:
        pass
    if n > 1 and ("v7" in kind or "7x" in kind):
        return 1
    return n


@partial(jax.jit, static_argnames=("images_per_step",))
def model_forward(x_nhwc_padded, w_mat, b_row, *, images_per_step):
    """x_nhwc_padded: (N, H, W, CIN_PAD) f32 (real channels in [:CIN], rest zero);
    w_mat: (CIN_PAD, COUT); b_row: (1, COUT).  Returns pooled output in NHWC."""
    n = x_nhwc_padded.shape[0]
    bb = images_per_step
    assert n % bb == 0
    x2d = x_nhwc_padded.reshape(n * H * W, CIN_PAD)             # metadata-only reshape

    out = pl.pallas_call(
        _fused_kernel,
        out_shape=jax.ShapeDtypeStruct((n, HOUT, 1, WOUT * COUT), jnp.float32),
        grid_spec=pltpu.PrefetchScalarGridSpec(
            num_scalar_prefetch=0,
            grid=(n // bb,),
            in_specs=[
                pl.BlockSpec((bb * H * W, CIN_PAD), lambda s: (s, 0)),
                pl.BlockSpec((CIN_PAD, COUT), lambda s: (0, 0)),
                pl.BlockSpec((1, COUT), lambda s: (0, 0)),
            ],
            out_specs=pl.BlockSpec((bb, HOUT, 1, WOUT * COUT), lambda s: (s, 0, 0, 0)),
            scratch_shapes=[pltpu.VMEM((bb, H + 1, W + 1, COUT), jnp.float32)],
        ),
        compiler_params=pltpu.CompilerParams(dimension_semantics=("parallel",)),
    )(x2d, w_mat, b_row)

    # (N, HOUT, 1, WOUT*COUT) -> (N, HOUT, WOUT, COUT): free metadata reshape on contiguous HBM.
    return out.reshape(n, HOUT, WOUT, COUT)


if __name__ == "__main__":
    key = jax.random.PRNGKey(0)
    kx, kw, kb = jax.random.split(key, 3)

    # deterministic inputs / parameters (Conv2d(196, 48, 1x1): weight (48,196,1,1), bias (48,))
    x_nchw = jax.random.normal(kx, (N, CIN, H, W), dtype=jnp.float32)
    bound = 1.0 / (CIN ** 0.5)
    w_oihw = jax.random.uniform(kw, (COUT, CIN, 1, 1), minval=-bound, maxval=bound,
                                dtype=jnp.float32)
    bias = jax.random.uniform(kb, (COUT,), minval=-bound, maxval=bound, dtype=jnp.float32)

    # one-time layout prep (outside the fast path): NCHW -> NHWC, zero-pad CIN 196 -> 256
    x_nhwc = jnp.transpose(x_nchw, (0, 2, 3, 1))
    x_pad = jnp.pad(x_nhwc, ((0, 0), (0, 0), (0, 0), (0, CIN_PAD - CIN)))
    w_real = jnp.transpose(w_oihw[:, :, 0, 0], (1, 0))          # (CIN, COUT)
    w_mat = jnp.zeros((CIN_PAD, COUT), jnp.float32).at[:CIN].set(w_real)
    b_row = bias.reshape(1, COUT)

    bb = _default_images_per_step(N)
    out_nhwc = model_forward(x_pad, w_mat, b_row, images_per_step=bb)
    out_nhwc = jax.block_until_ready(out_nhwc)
    out_nchw = jnp.transpose(out_nhwc, (0, 3, 1, 2))            # PyTorch layout (for checks only)

    # pure-JAX reference for correctness (unpadded channels)
    y_ref = jnp.maximum(jnp.einsum("nhwc,cd->nhwd", x_nhwc, w_real) + b_row, 0.0)
    pooled = lax.reduce_window(y_ref, -jnp.inf, lax.max,
                               window_dimensions=(1, 3, 3, 1),
                               window_strides=(1, 2, 2, 1),
                               padding=((0, 0), (1, 1), (1, 1), (0, 0)))
    ref_nhwc = jnp.minimum(jnp.maximum(pooled, CLAMP_MIN), CLAMP_MAX)

    assert out_nhwc.shape == (N, HOUT, WOUT, COUT)
    assert out_nchw.shape == (N, COUT, HOUT, WOUT)
    assert jnp.allclose(out_nhwc, ref_nhwc, atol=1e-5, rtol=1e-5), \
        float(jnp.max(jnp.abs(out_nhwc - ref_nhwc)))

    print("KERNEL_OK")
</pallas_src>

<mosaic_0001>
module attributes {stable_mosaic.version = 11 : i64} {
  func.func @_fused_kernel(%arg0: i32, %arg1: memref<512x256xf32, #tpu.memory_space<vmem>>, %arg2: memref<256x48xf32, #tpu.memory_space<vmem>>, %arg3: memref<1x48xf32, #tpu.memory_space<vmem>>, %arg4: memref<2x8x1x384xf32, #tpu.memory_space<vmem>>, %arg5: memref<2x17x17x48xf32, #tpu.memory_space<vmem>>) attributes {dimension_semantics = [#tpu.dimension_semantics<parallel>], iteration_bounds = array<i64: 1>, scalar_prefetch = 0 : i64, scratch_operands = 1 : i64, tpu.core_type = #tpu.core_type<tc>, window_params = [{transform_indices = @transform_0, window_bounds = array<i64: 512, 256>}, {pipeline_mode = #tpu.pipeline_mode<synchronous>, transform_indices = @transform_1, window_bounds = array<i64: 256, 48>}, {pipeline_mode = #tpu.pipeline_mode<synchronous>, transform_indices = @transform_2, window_bounds = array<i64: 1, 48>}, {transform_indices = @transform_3, window_bounds = array<i64: 2, 8, 1, 384>}]} {
    %c0 = arith.constant 0 : index
    %c0_0 = arith.constant 0 : index
    %0 = vector.load %arg1[%c0, %c0_0] : memref<512x256xf32, #tpu.memory_space<vmem>>, vector<512x256xf32>
    %c0_1 = arith.constant 0 : index
    %c0_2 = arith.constant 0 : index
    %1 = vector.load %arg2[%c0_1, %c0_2] : memref<256x48xf32, #tpu.memory_space<vmem>>, vector<256x48xf32>
    %cst = arith.constant dense<0.000000e+00> : vector<512x48xf32>
    %2 = tpu.matmul %0, %1, %cst {dimension_numbers = #tpu.dot_dimension_numbers<[1], [0], [0], [1], [0, 0, 1, 1], [], []>} : vector<512x256xf32>, vector<256x48xf32>, vector<512x48xf32> -> vector<512x48xf32>
    %c0_3 = arith.constant 0 : index
    %c0_4 = arith.constant 0 : index
    %3 = vector.load %arg3[%c0_3, %c0_4] : memref<1x48xf32, #tpu.memory_space<vmem>>, vector<1x48xf32>
    %4 = vector.broadcast %3 : vector<1x48xf32> to vector<512x48xf32>
    %5 = arith.addf %2, %4 : vector<512x48xf32>
    %cst_5 = arith.constant 0.000000e+00 : f32
    %6 = vector.broadcast %cst_5 : f32 to vector<512x48xf32>
    %7 = arith.maximumf %5, %6 : vector<512x48xf32>
    %cst_6 = arith.constant 0.000000e+00 : f32
    %8 = vector.broadcast %cst_6 : f32 to vector<2x1x17x48xf32>
    %c0_7 = arith.constant 0 : index
    %c0_8 = arith.constant 0 : index
    %c0_9 = arith.constant 0 : index
    %c0_10 = arith.constant 0 : index
    %9 = vector.load %arg5[%c0_7, %c0_8, %c0_9, %c0_10] : memref<2x17x17x48xf32, #tpu.memory_space<vmem>>, vector<2x1x17x48xf32>
    tpu.vector_store %arg5[%c0_7, %c0_8, %c0_9, %c0_10], %8 {strides = array<i32>} : memref<2x17x17x48xf32, #tpu.memory_space<vmem>>, vector<2x1x17x48xf32>,
    %cst_11 = arith.constant 0.000000e+00 : f32
    %10 = vector.broadcast %cst_11 : f32 to vector<2x17x1x48xf32>
    %c0_12 = arith.constant 0 : index
    %c0_13 = arith.constant 0 : index
    %c0_14 = arith.constant 0 : index
    %c0_15 = arith.constant 0 : index
    %11 = vector.load %arg5[%c0_12, %c0_13, %c0_14, %c0_15] : memref<2x17x17x48xf32, #tpu.memory_space<vmem>>, vector<2x17x1x48xf32>
    tpu.vector_store %arg5[%c0_12, %c0_13, %c0_14, %c0_15], %10 {strides = array<i32>} : memref<2x17x17x48xf32, #tpu.memory_space<vmem>>, vector<2x17x1x48xf32>,
    %12 = vector.shape_cast %7 : vector<512x48xf32> to vector<2x16x16x48xf32>
    %c0_16 = arith.constant 0 : index
    %c1 = arith.constant 1 : index
    %c1_17 = arith.constant 1 : index
    %c0_18 = arith.constant 0 : index
    %13 = vector.load %arg5[%c0_16, %c1, %c1_17, %c0_18] : memref<2x17x17x48xf32, #tpu.memory_space<vmem>>, vector<2x16x16x48xf32>
    tpu.vector_store %arg5[%c0_16, %c1, %c1_17, %c0_18], %12 {strides = array<i32>} : memref<2x17x17x48xf32, #tpu.memory_space<vmem>>, vector<2x16x16x48xf32>,
    %c0_19 = arith.constant 0 : index
    %c0_20 = arith.constant 0 : index
    %c0_21 = arith.constant 0 : index
    %c0_22 = arith.constant 0 : index
    %14 = vector.load %arg5[%c0_19, %c0_20, %c0_21, %c0_22] : memref<2x17x17x48xf32, #tpu.memory_space<vmem>>, vector<2x16x17x48xf32>
    %15 = vector.shape_cast %14 : vector<2x16x17x48xf32> to vector<2x8x2x17x48xf32>
    %c0_23 = arith.constant 0 : index
    %c1_24 = arith.constant 1 : index
    %c0_25 = arith.constant 0 : index
    %c0_26 = arith.constant 0 : index
    %16 = vector.load %arg5[%c0_23, %c1_24, %c0_25, %c0_26] : memref<2x17x17x48xf32, #tpu.memory_space<vmem>>, vector<2x16x17x48xf32>
    %17 = vector.shape_cast %16 : vector<2x16x17x48xf32> to vector<2x8x2x17x48xf32>
    %18 = vector.extract_strided_slice %15 {offsets = [0, 0, 0, 0, 0], sizes = [2, 8, 1, 17, 48], strides = [1, 1, 1, 1, 1]} : vector<2x8x2x17x48xf32> to vector<2x8x1x17x48xf32>
    %19 = vector.shape_cast %18 : vector<2x8x1x17x48xf32> to vector<2x8x17x48xf32>
    %20 = vector.extract_strided_slice %15 {offsets = [0, 0, 1, 0, 0], sizes = [2, 8, 1, 17, 48], strides = [1, 1, 1, 1, 1]} : vector<2x8x2x17x48xf32> to vector<2x8x1x17x48xf32>
    %21 = vector.shape_cast %20 : vector<2x8x1x17x48xf32> to vector<2x8x17x48xf32>
    %22 = arith.maximumf %19, %21 : vector<2x8x17x48xf32>
    %23 = vector.extract_strided_slice %17 {offsets = [0, 0, 1, 0, 0], sizes = [2, 8, 1, 17, 48], strides = [1, 1, 1, 1, 1]} : vector<2x8x2x17x48xf32> to vector<2x8x1x17x48xf32>
    %24 = vector.shape_cast %23 : vector<2x8x1x17x48xf32> to vector<2x8x17x48xf32>
    %25 = arith.maximumf %22, %24 : vector<2x8x17x48xf32>
    %26 = vector.extract_strided_slice %25 {offsets = [0, 0, 0, 0], sizes = [2, 8, 1, 48], strides = [1, 1, 1, 1]} : vector<2x8x17x48xf32> to vector<2x8x1x48xf32>
    %27 = vector.extract_strided_slice %25 {offsets = [0, 0, 1, 0], sizes = [2, 8, 1, 48], strides = [1, 1, 1, 1]} : vector<2x8x17x48xf32> to vector<2x8x1x48xf32>
    %28 = vector.extract_strided_slice %25 {offsets = [0, 0, 2, 0], sizes = [2, 8, 1, 48], strides = [1, 1, 1, 1]} : vector<2x8x17x48xf32> to vector<2x8x1x48xf32>
    %29 = arith.maximumf %26, %27 : vector<2x8x1x48xf32>
    %30 = arith.maximumf %29, %28 : vector<2x8x1x48xf32>
    %31 = vector.extract_strided_slice %25 {offsets = [0, 0, 2, 0], sizes = [2, 8, 1, 48], strides = [1, 1, 1, 1]} : vector<2x8x17x48xf32> to vector<2x8x1x48xf32>
    %32 = vector.extract_strided_slice %25 {offsets = [0, 0, 3, 0], sizes = [2, 8, 1, 48], strides = [1, 1, 1, 1]} : vector<2x8x17x48xf32> to vector<2x8x1x48xf32>
    %33 = vector.extract_strided_slice %25 {offsets = [0, 0, 4, 0], sizes = [2, 8, 1, 48], strides = [1, 1, 1, 1]} : vector<2x8x17x48xf32> to vector<2x8x1x48xf32>
    %34 = arith.maximumf %31, %32 : vector<2x8x1x48xf32>
    %35 = arith.maximumf %34, %33 : vector<2x8x1x48xf32>
    %36 = vector.extract_strided_slice %25 {offsets = [0, 0, 4, 0], sizes = [2, 8, 1, 48], strides = [1, 1, 1, 1]} : vector<2x8x17x48xf32> to vector<2x8x1x48xf32>
    %37 = vector.extract_strided_slice %25 {offsets = [0, 0, 5, 0], sizes = [2, 8, 1, 48], strides = [1, 1, 1, 1]} : vector<2x8x17x48xf32> to vector<2x8x1x48xf32>
    %38 = vector.extract_strided_slice %25 {offsets = [0, 0, 6, 0], sizes = [2, 8, 1, 48], strides = [1, 1, 1, 1]} : vector<2x8x17x48xf32> to vector<2x8x1x48xf32>
    %39 = arith.maximumf %36, %37 : vector<2x8x1x48xf32>
    %40 = arith.maximumf %39, %38 : vector<2x8x1x48xf32>
    %41 = vector.extract_strided_slice %25 {offsets = [0, 0, 6, 0], sizes = [2, 8, 1, 48], strides = [1, 1, 1, 1]} : vector<2x8x17x48xf32> to vector<2x8x1x48xf32>
    %42 = vector.extract_strided_slice %25 {offsets = [0, 0, 7, 0], sizes = [2, 8, 1, 48], strides = [1, 1, 1, 1]} : vector<2x8x17x48xf32> to vector<2x8x1x48xf32>
    %43 = vector.extract_strided_slice %25 {offsets = [0, 0, 8, 0], sizes = [2, 8, 1, 48], strides = [1, 1, 1, 1]} : vector<2x8x17x48xf32> to vector<2x8x1x48xf32>
    %44 = arith.maximumf %41, %42 : vector<2x8x1x48xf32>
    %45 = arith.maximumf %44, %43 : vector<2x8x1x48xf32>
    %46 = vector.extract_strided_slice %25 {offsets = [0, 0, 8, 0], sizes = [2, 8, 1, 48], strides = [1, 1, 1, 1]} : vector<2x8x17x48xf32> to vector<2x8x1x48xf32>
    %47 = vector.extract_strided_slice %25 {offsets = [0, 0, 9, 0], sizes = [2, 8, 1, 48], strides = [1, 1, 1, 1]} : vector<2x8x17x48xf32> to vector<2x8x1x48xf32>
    %48 = vector.extract_strided_slice %25 {offsets = [0, 0, 10, 0], sizes = [2, 8, 1, 48], strides = [1, 1, 1, 1]} : vector<2x8x17x48xf32> to vector<2x8x1x48xf32>
    %49 = arith.maximumf %46, %47 : vector<2x8x1x48xf32>
    %50 = arith.maximumf %49, %48 : vector<2x8x1x48xf32>
    %51 = vector.extract_strided_slice %25 {offsets = [0, 0, 10, 0], sizes = [2, 8, 1, 48], strides = [1, 1, 1, 1]} : vector<2x8x17x48xf32> to vector<2x8x1x48xf32>
    %52 = vector.extract_strided_slice %25 {offsets = [0, 0, 11, 0], sizes = [2, 8, 1, 48], strides = [1, 1, 1, 1]} : vector<2x8x17x48xf32> to vector<2x8x1x48xf32>
    %53 = vector.extract_strided_slice %25 {offsets = [0, 0, 12, 0], sizes = [2, 8, 1, 48], strides = [1, 1, 1, 1]} : vector<2x8x17x48xf32> to vector<2x8x1x48xf32>
    %54 = arith.maximumf %51, %52 : vector<2x8x1x48xf32>
    %55 = arith.maximumf %54, %53 : vector<2x8x1x48xf32>
    %56 = vector.extract_strided_slice %25 {offsets = [0, 0, 12, 0], sizes = [2, 8, 1, 48], strides = [1, 1, 1, 1]} : vector<2x8x17x48xf32> to vector<2x8x1x48xf32>
    %57 = vector.extract_strided_slice %25 {offsets = [0, 0, 13, 0], sizes = [2, 8, 1, 48], strides = [1, 1, 1, 1]} : vector<2x8x17x48xf32> to vector<2x8x1x48xf32>
    %58 = vector.extract_strided_slice %25 {offsets = [0, 0, 14, 0], sizes = [2, 8, 1, 48], strides = [1, 1, 1, 1]} : vector<2x8x17x48xf32> to vector<2x8x1x48xf32>
    %59 = arith.maximumf %56, %57 : vector<2x8x1x48xf32>
    %60 = arith.maximumf %59, %58 : vector<2x8x1x48xf32>
    %61 = vector.extract_strided_slice %25 {offsets = [0, 0, 14, 0], sizes = [2, 8, 1, 48], strides = [1, 1, 1, 1]} : vector<2x8x17x48xf32> to vector<2x8x1x48xf32>
    %62 = vector.extract_strided_slice %25 {offsets = [0, 0, 15, 0], sizes = [2, 8, 1, 48], strides = [1, 1, 1, 1]} : vector<2x8x17x48xf32> to vector<2x8x1x48xf32>
    %63 = vector.extract_strided_slice %25 {offsets = [0, 0, 16, 0], sizes = [2, 8, 1, 48], strides = [1, 1, 1, 1]} : vector<2x8x17x48xf32> to vector<2x8x1x48xf32>
    %64 = arith.maximumf %61, %62 : vector<2x8x1x48xf32>
    %65 = arith.maximumf %64, %63 : vector<2x8x1x48xf32>
    %66 = tpu.concatenate %30, %35, %40, %45, %50, %55, %60, %65 in 3 : vector<2x8x1x48xf32>, vector<2x8x1x48xf32>, vector<2x8x1x48xf32>, vector<2x8x1x48xf32>, vector<2x8x1x48xf32>, vector<2x8x1x48xf32>, vector<2x8x1x48xf32>, vector<2x8x1x48xf32> -> vector<2x8x1x384xf32>
    %cst_27 = arith.constant 2.000000e-03 : f32
    %67 = vector.broadcast %cst_27 : f32 to vector<2x8x1x384xf32>
    %68 = arith.maximumf %66, %67 : vector<2x8x1x384xf32>
    %cst_28 = arith.constant 3.000000e-03 : f32
    %69 = vector.broadcast %cst_28 : f32 to vector<2x8x1x384xf32>
    %70 = arith.minimumf %68, %69 : vector<2x8x1x384xf32>
    %c0_29 = arith.constant 0 : index
    %c0_30 = arith.constant 0 : index
    %c0_31 = arith.constant 0 : index
    %c0_32 = arith.constant 0 : index
    %71 = vector.load %arg4[%c0_29, %c0_30, %c0_31, %c0_32] : memref<2x8x1x384xf32, #tpu.memory_space<vmem>>, vector<2x8x1x384xf32>
    tpu.vector_store %arg4[%c0_29, %c0_30, %c0_31, %c0_32], %70 {strides = array<i32>} : memref<2x8x1x384xf32, #tpu.memory_space<vmem>>, vector<2x8x1x384xf32>,
    return
  }
  func.func @transform_0(%arg0: i32) -> (i32, i32) {
    %c0_i32 = arith.constant 0 : i32
    %c0_i32_0 = arith.constant 0 : i32
    return %arg0, %c0_i32 : i32, i32
  }
  func.func @transform_1(%arg0: i32) -> (i32, i32) {
    %c0_i32 = arith.constant 0 : i32
    %c0_i32_0 = arith.constant 0 : i32
    %c0_i32_1 = arith.constant 0 : i32
    return %c0_i32, %c0_i32_0 : i32, i32
  }
  func.func @transform_2(%arg0: i32) -> (i32, i32) {
    %c0_i32 = arith.constant 0 : i32
    %c0_i32_0 = arith.constant 0 : i32
    %c0_i32_1 = arith.constant 0 : i32
    return %c0_i32, %c0_i32_0 : i32, i32
  }
  func.func @transform_3(%arg0: i32) -> (i32, i32, i32, i32) {
    %c0_i32 = arith.constant 0 : i32
    %c0_i32_0 = arith.constant 0 : i32
    %c0_i32_1 = arith.constant 0 : i32
    %c0_i32_2 = arith.constant 0 : i32
    return %arg0, %c0_i32, %c0_i32_0, %c0_i32_1 : i32, i32, i32, i32
  }
}

</mosaic_0001>

<llo_original>
// kernel: model_forward.1
$region0: #{model_forward.1}
  #allocation0 [shape = 'u32[]', space=smem, size = 0x4, offset = 0x4, fixed_abs, tag = 'smem constant byte address 0x4 - core index']
  #allocation1 [shape = 'u32[144,128]{1,0:T(1,128)}', space=vmem, size = 0x12000, scoped, tag = 'internal scratch']
  #allocation2 [shape = 'f32[2,17,17,48]{3,2,1,0:T(8,128)}', space=vmem, size = 0x66000, scoped, tag = 'scratch operand']
  %s0 = inlined_call_operand.hbm [shape: f32[512,256], index: 0, kind: input, shape index: {}]
  %s1 = inlined_call_operand.vmem [shape: f32[256,48], index: 1, kind: input, shape index: {}]
  %s2 = inlined_call_operand.vmem [shape: f32[1,48], index: 2, kind: input, shape index: {}]
  %s3 = inlined_call_operand.vmem [shape: f32[2,8,1,384], index: 3, kind: output, shape index: {}]
  %s4 = sld [smem:[#allocation0]]
  $region26: #{model_forward.1} parent=0
    _
  %s6 = ssub.s32 1, %s4
  %s7 = scalar_select 0, %s6, %s4
  $region1: #{model_forward.1} parent=0
    #allocation3 [shape = 'u8[524288]{0}', space=vmem, size = 0x80000, scoped, tag = 'input window, operand 0, single buffered']
    #allocation4 [shape = 's32[1]{0}', space=sflag, size = 0x4, scoped, tag = 'scoped memory for model_forward.1']
    %8 = vsyncpa [#allocation4], 0
    // Predicated region
    $region2: #{model_forward.1} parent=1 // pred_check
      _
    $region3: #{model_forward.1} parent=1 // pred_check_branch
      %10 = sbr.rel (0) target = $region5
    $region4: #{model_forward.1} parent=1 // pred_region
      %s12 = ssub.s32 16384, 16384
      %13 = vsyncadd [#allocation4], %s12
      %s14 = sshll.u32 [#allocation3], 4
      %s15 = int_to_ptr.vmem [resolvable:$true] %s14
      %20 = dma.hbm_to_vmem [thread:$0]  %s0, 16384, %s15, [#allocation4], 256, 256, 16
    $region5: #{model_forward.1} parent=1 // pred_fallthru
      _
    // Predicated region
    $region6: #{model_forward.1} parent=1 // pred_check
      _
    $region7: #{model_forward.1} parent=1 // pred_check_branch
      %22 = sbr.rel (0) target = $region9
    $region8: #{model_forward.1} parent=1 // pred_region
      _
    $region9: #{model_forward.1} parent=1 // pred_fallthru
      _
    // Predicated region
    $region10: #{model_forward.1} parent=1 // pred_check
      _
    $region11: #{model_forward.1} parent=1 // pred_check_branch
      %24 = sbr.rel (0) target = $region13
    $region12: #{model_forward.1} parent=1 // pred_region
      _
    $region13: #{model_forward.1} parent=1 // pred_fallthru
      _
    // Predicated region
    $region14: #{model_forward.1} parent=1 // pred_check
      _
    $region15: #{model_forward.1} parent=1 // pred_check_branch
      %26 = sbr.rel (0) target = $region17
    $region16: #{model_forward.1} parent=1 // pred_region
      %27 = dma.done [#allocation4], 16384
    $region17: #{model_forward.1} parent=1 // pred_fallthru
      _
    %v28 = vld [vmem:[#allocation3] sm:$0xff]
    %v29 = vld [vmem:[#allocation3 + $0x8] sm:$0xff]
    %v30 = vld [vmem:[#allocation3 + $0x10] sm:$0xff]
    %v31 = vld [vmem:[#allocation3 + $0x18] sm:$0xff]
    %v32 = vld [vmem:[#allocation3 + $0x20] sm:$0xff]
    %v33 = vld [vmem:[#allocation3 + $0x28] sm:$0xff]
    %v34 = vld [vmem:[#allocation3 + $0x30] sm:$0xff]
    %v35 = vld [vmem:[#allocation3 + $0x38] sm:$0xff]
    %v36 = vld [vmem:[#allocation3 + $0x40] sm:$0xff]
    %v37 = vld [vmem:[#allocation3 + $0x48] sm:$0xff]
    %v38 = vld [vmem:[#allocation3 + $0x50] sm:$0xff]
    %v39 = vld [vmem:[#allocation3 + $0x58] sm:$0xff]
    %v40 = vld [vmem:[#allocation3 + $0x60] sm:$0xff]
    %v41 = vld [vmem:[#allocation3 + $0x68] sm:$0xff]
    %v42 = vld [vmem:[#allocation3 + $0x70] sm:$0xff]
    %v43 = vld [vmem:[#allocation3 + $0x78] sm:$0xff]
    %v44 = vld [vmem:[#allocation3 + $0x80] sm:$0xff]
    %v45 = vld [vmem:[#allocation3 + $0x88] sm:$0xff]
    %v46 = vld [vmem:[#allocation3 + $0x90] sm:$0xff]
    %v47 = vld [vmem:[#allocation3 + $0x98] sm:$0xff]
    %v48 = vld [vmem:[#allocation3 + $0xa0] sm:$0xff]
    %v49 = vld [vmem:[#allocation3 + $0xa8] sm:$0xff]
    %v50 = vld [vmem:[#allocation3 + $0xb0] sm:$0xff]
    %v51 = vld [vmem:[#allocation3 + $0xb8] sm:$0xff]
    %v52 = vld [vmem:[#allocation3 + $0xc0] sm:$0xff]
    %v53 = vld [vmem:[#allocation3 + $0xc8] sm:$0xff]
    %v54 = vld [vmem:[#allocation3 + $0xd0] sm:$0xff]
    %v55 = vld [vmem:[#allocation3 + $0xd8] sm:$0xff]
    %v56 = vld [vmem:[#allocation3 + $0xe0] sm:$0xff]
    %v57 = vld [vmem:[#allocation3 + $0xe8] sm:$0xff]
    %v58 = vld [vmem:[#allocation3 + $0xf0] sm:$0xff]
    %v59 = vld [vmem:[#allocation3 + $0xf8] sm:$0xff]
    %v60 = vld [vmem:[#allocation3 + $0x100] sm:$0xff]
    %v61 = vld [vmem:[#allocation3 + $0x108] sm:$0xff]
    %v62 = vld [vmem:[#allocation3 + $0x110] sm:$0xff]
    %v63 = vld [vmem:[#allocation3 + $0x118] sm:$0xff]
    %v64 = vld [vmem:[#allocation3 + $0x120] sm:$0xff]
    %v65 = vld [vmem:[#allocation3 + $0x128] sm:$0xff]
    %v66 = vld [vmem:[#allocation3 + $0x130] sm:$0xff]
    %v67 = vld [vmem:[#allocation3 + $0x138] sm:$0xff]
    %v68 = vld [vmem:[#allocation3 + $0x140] sm:$0xff]
    %v69 = vld [vmem:[#allocation3 + $0x148] sm:$0xff]
    %v70 = vld [vmem:[#allocation3 + $0x150] sm:$0xff]
    %v71 = vld [vmem:[#allocation3 + $0x158] sm:$0xff]
    %v72 = vld [vmem:[#allocation3 + $0x160] sm:$0xff]
    %v73 = vld [vmem:[#allocation3 + $0x168] sm:$0xff]
    %v74 = vld [vmem:[#allocation3 + $0x170] sm:$0xff]
    %v75 = vld [vmem:[#allocation3 + $0x178] sm:$0xff]
    %v76 = vld [vmem:[#allocation3 + $0x180] sm:$0xff]
    %v77 = vld [vmem:[#allocation3 + $0x188] sm:$0xff]
    %v78 = vld [vmem:[#allocation3 + $0x190] sm:$0xff]
    %v79 = vld [vmem:[#allocation3 + $0x198] sm:$0xff]
    %v80 = vld [vmem:[#allocation3 + $0x1a0] sm:$0xff]
    %v81 = vld [vmem:[#allocation3 + $0x1a8] sm:$0xff]
    %v82 = vld [vmem:[#allocation3 + $0x1b0] sm:$0xff]
    %v83 = vld [vmem:[#allocation3 + $0x1b8] sm:$0xff]
    %v84 = vld [vmem:[#allocation3 + $0x1c0] sm:$0xff]
    %v85 = vld [vmem:[#allocation3 + $0x1c8] sm:$0xff]
    %v86 = vld [vmem:[#allocation3 + $0x1d0] sm:$0xff]
    %v87 = vld [vmem:[#allocation3 + $0x1d8] sm:$0xff]
    %v88 = vld [vmem:[#allocation3 + $0x1e0] sm:$0xff]
    %v89 = vld [vmem:[#allocation3 + $0x1e8] sm:$0xff]
    %v90 = vld [vmem:[#allocation3 + $0x1f0] sm:$0xff]
    %v91 = vld [vmem:[#allocation3 + $0x1f8] sm:$0xff]
    %v92 = vld [vmem:[#allocation3 + $0x200] sm:$0xff]
    %v93 = vld [vmem:[#allocation3 + $0x208] sm:$0xff]
    %v94 = vld [vmem:[#allocation3 + $0x210] sm:$0xff]
    %v95 = vld [vmem:[#allocation3 + $0x218] sm:$0xff]
    %v96 = vld [vmem:[#allocation3 + $0x220] sm:$0xff]
    %v97 = vld [vmem:[#allocation3 + $0x228] sm:$0xff]
    %v98 = vld [vmem:[#allocation3 + $0x230] sm:$0xff]
    %v99 = vld [vmem:[#allocation3 + $0x238] sm:$0xff]
    %v100 = vld [vmem:[#allocation3 + $0x240] sm:$0xff]
    %v101 = vld [vmem:[#allocation3 + $0x248] sm:$0xff]
    %v102 = vld [vmem:[#allocation3 + $0x250] sm:$0xff]
    %v103 = vld [vmem:[#allocation3 + $0x258] sm:$0xff]
    %v104 = vld [vmem:[#allocation3 + $0x260] sm:$0xff]
    %v105 = vld [vmem:[#allocation3 + $0x268] sm:$0xff]
    %v106 = vld [vmem:[#allocation3 + $0x270] sm:$0xff]
    %v107 = vld [vmem:[#allocation3 + $0x278] sm:$0xff]
    %v108 = vld [vmem:[#allocation3 + $0x280] sm:$0xff]
    %v109 = vld [vmem:[#allocation3 + $0x288] sm:$0xff]
    %v110 = vld [vmem:[#allocation3 + $0x290] sm:$0xff]
    %v111 = vld [vmem:[#allocation3 + $0x298] sm:$0xff]
    %v112 = vld [vmem:[#allocation3 + $0x2a0] sm:$0xff]
    %v113 = vld [vmem:[#allocation3 + $0x2a8] sm:$0xff]
    %v114 = vld [vmem:[#allocation3 + $0x2b0] sm:$0xff]
    %v115 = vld [vmem:[#allocation3 + $0x2b8] sm:$0xff]
    %v116 = vld [vmem:[#allocation3 + $0x2c0] sm:$0xff]
    %v117 = vld [vmem:[#allocation3 + $0x2c8] sm:$0xff]
    %v118 = vld [vmem:[#allocation3 + $0x2d0] sm:$0xff]
    %v119 = vld [vmem:[#allocation3 + $0x2d8] sm:$0xff]
    %v120 = vld [vmem:[#allocation3 + $0x2e0] sm:$0xff]
    %v121 = vld [vmem:[#allocation3 + $0x2e8] sm:$0xff]
    %v122 = vld [vmem:[#allocation3 + $0x2f0] sm:$0xff]
    %v123 = vld [vmem:[#allocation3 + $0x2f8] sm:$0xff]
    %v124 = vld [vmem:[#allocation3 + $0x300] sm:$0xff]
    %v125 = vld [vmem:[#allocation3 + $0x308] sm:$0xff]
    %v126 = vld [vmem:[#allocation3 + $0x310] sm:$0xff]
    %v127 = vld [vmem:[#allocation3 + $0x318] sm:$0xff]
    %v128 = vld [vmem:[#allocation3 + $0x320] sm:$0xff]
    %v129 = vld [vmem:[#allocation3 + $0x328] sm:$0xff]
    %v130 = vld [vmem:[#allocation3 + $0x330] sm:$0xff]
    %v131 = vld [vmem:[#allocation3 + $0x338] sm:$0xff]
    %v132 = vld [vmem:[#allocation3 + $0x340] sm:$0xff]
    %v133 = vld [vmem:[#allocation3 + $0x348] sm:$0xff]
    %v134 = vld [vmem:[#allocation3 + $0x350] sm:$0xff]
    %v135 = vld [vmem:[#allocation3 + $0x358] sm:$0xff]
    %v136 = vld [vmem:[#allocation3 + $0x360] sm:$0xff]
    %v137 = vld [vmem:[#allocation3 + $0x368] sm:$0xff]
    %v138 = vld [vmem:[#allocation3 + $0x370] sm:$0xff]
    %v139 = vld [vmem:[#allocation3 + $0x378] sm:$0xff]
    %v140 = vld [vmem:[#allocation3 + $0x380] sm:$0xff]
    %v141 = vld [vmem:[#allocation3 + $0x388] sm:$0xff]
    %v142 = vld [vmem:[#allocation3 + $0x390] sm:$0xff]
    %v143 = vld [vmem:[#allocation3 + $0x398] sm:$0xff]
    %v144 = vld [vmem:[#allocation3 + $0x3a0] sm:$0xff]
    %v145 = vld [vmem:[#allocation3 + $0x3a8] sm:$0xff]
    %v146 = vld [vmem:[#allocation3 + $0x3b0] sm:$0xff]
    %v147 = vld [vmem:[#allocation3 + $0x3b8] sm:$0xff]
    %v148 = vld [vmem:[#allocation3 + $0x3c0] sm:$0xff]
    %v149 = vld [vmem:[#allocation3 + $0x3c8] sm:$0xff]
    %v150 = vld [vmem:[#allocation3 + $0x3d0] sm:$0xff]
    %v151 = vld [vmem:[#allocation3 + $0x3d8] sm:$0xff]
    %v152 = vld [vmem:[#allocation3 + $0x3e0] sm:$0xff]
    %v153 = vld [vmem:[#allocation3 + $0x3e8] sm:$0xff]
    %v154 = vld [vmem:[#allocation3 + $0x3f0] sm:$0xff]
    %v155 = vld [vmem:[#allocation3 + $0x3f8] sm:$0xff]
    %v156 = vld [vmem:[%s1] sm:$0xff]
    %v157 = vld [vmem:[%s1 + $0x8] sm:$0xff]
    %v158 = vld [vmem:[%s1 + $0x10] sm:$0xff]
    %v159 = vld [vmem:[%s1 + $0x18] sm:$0xff]
    %v160 = vld [vmem:[%s1 + $0x20] sm:$0xff]
    %v161 = vld [vmem:[%s1 + $0x28] sm:$0xff]
    %v162 = vld [vmem:[%s1 + $0x30] sm:$0xff]
    %v163 = vld [vmem:[%s1 + $0x38] sm:$0xff]
    %v164 = vld [vmem:[%s1 + $0x40] sm:$0xff]
    %v165 = vld [vmem:[%s1 + $0x48] sm:$0xff]
    %v166 = vld [vmem:[%s1 + $0x50] sm:$0xff]
    %v167 = vld [vmem:[%s1 + $0x58] sm:$0xff]
    %v168 = vld [vmem:[%s1 + $0x60] sm:$0xff]
    %v169 = vld [vmem:[%s1 + $0x68] sm:$0xff]
    %v170 = vld [vmem:[%s1 + $0x70] sm:$0xff]
    %v171 = vld [vmem:[%s1 + $0x78] sm:$0xff]
    %v172 = vld [vmem:[%s1 + $0x80] sm:$0xff]
    %v173 = vld [vmem:[%s1 + $0x88] sm:$0xff]
    %v174 = vld [vmem:[%s1 + $0x90] sm:$0xff]
    %v175 = vld [vmem:[%s1 + $0x98] sm:$0xff]
    %v176 = vld [vmem:[%s1 + $0xa0] sm:$0xff]
    %v177 = vld [vmem:[%s1 + $0xa8] sm:$0xff]
    %v178 = vld [vmem:[%s1 + $0xb0] sm:$0xff]
    %v179 = vld [vmem:[%s1 + $0xb8] sm:$0xff]
    %v180 = vld [vmem:[%s1 + $0xc0] sm:$0xff]
    %v181 = vld [vmem:[%s1 + $0xc8] sm:$0xff]
    %v182 = vld [vmem:[%s1 + $0xd0] sm:$0xff]
    %v183 = vld [vmem:[%s1 + $0xd8] sm:$0xff]
    %v184 = vld [vmem:[%s1 + $0xe0] sm:$0xff]
    %v185 = vld [vmem:[%s1 + $0xe8] sm:$0xff]
    %v186 = vld [vmem:[%s1 + $0xf0] sm:$0xff]
    %v187 = vld [vmem:[%s1 + $0xf8] sm:$0xff]
    %v188 = vld [vmem:[%s2] sm:$0x1]
    %v190 = vlaneseq
    %v191 = vshrl.u32 %v190, 7
    %v192 = vsub.s32 0, %v191
    %v193 = vrot.slane %v188, %v192
    %195 = vmatprep.subr.mxu0 0.0
    %196 = vmatpush1.msra.mxu0 %v171
    %197 = vmatprep.subr.mxu0 0.0
    %198 = vmatpush1.msra.mxu0 %v170
    %199 = vmatprep.subr.mxu0 0.0
    %200 = vmatpush1.msra.mxu0 %v169
    %201 = vmatprep.subr.mxu0 0.0
    %202 = vmatpush1.msra.mxu0 %v168
    %203 = vmatprep.subr.mxu0 0.0
    %204 = vmatpush1.msra.mxu0 %v167
    %205 = vmatprep.subr.mxu0 0.0
    %206 = vmatpush1.msra.mxu0 %v166
    %207 = vmatprep.subr.mxu0 0.0
    %208 = vmatpush1.msra.mxu0 %v165
    %209 = vmatprep.subr.mxu0 0.0
    %210 = vmatpush1.msra.mxu0 %v164
    %211 = vmatprep.subr.mxu0 0.0
    %212 = vmatpush1.msra.mxu0 %v163
    %213 = vmatprep.subr.mxu0 0.0
    %214 = vmatpush1.msra.mxu0 %v162
    %215 = vmatprep.subr.mxu0 0.0
    %216 = vmatpush1.msra.mxu0 %v161
    %217 = vmatprep.subr.mxu0 0.0
    %218 = vmatpush1.msra.mxu0 %v160
    %219 = vmatprep.subr.mxu0 0.0
    %220 = vmatpush1.msra.mxu0 %v159
    %221 = vmatprep.subr.mxu0 0.0
    %222 = vmatpush1.msra.mxu0 %v158
    %223 = vmatprep.subr.mxu0 0.0
    %224 = vmatpush1.msra.mxu0 %v157
    %225 = vmatprep.subr.mxu0 0.0
    %226 = vmatpush1.msra.mxu0 %v156
    %227 = vmatprep.subr.mxu0 0.0
    %228 = vmatpush2.msra.mxu0 %v187
    %229 = vmatprep.subr.mxu0 0.0
    %230 = vmatpush2.msra.mxu0 %v186
    %231 = vmatprep.subr.mxu0 0.0
    %232 = vmatpush2.msra.mxu0 %v185
    %233 = vmatprep.subr.mxu0 0.0
    %234 = vmatpush2.msra.mxu0 %v184
    %235 = vmatprep.subr.mxu0 0.0
    %236 = vmatpush2.msra.mxu0 %v183
    %237 = vmatprep.subr.mxu0 0.0
    %238 = vmatpush2.msra.mxu0 %v182
    %239 = vmatprep.subr.mxu0 0.0
    %240 = vmatpush2.msra.mxu0 %v181
    %241 = vmatprep.subr.mxu0 0.0
    %242 = vmatpush2.msra.mxu0 %v180
    %243 = vmatprep.subr.mxu0 0.0
    %244 = vmatpush2.msra.mxu0 %v179
    %245 = vmatprep.subr.mxu0 0.0
    %246 = vmatpush2.msra.mxu0 %v178
    %247 = vmatprep.subr.mxu0 0.0
    %248 = vmatpush2.msra.mxu0 %v177
    %249 = vmatprep.subr.mxu0 0.0
    %250 = vmatpush2.msra.mxu0 %v176
    %251 = vmatprep.subr.mxu0 0.0
    %252 = vmatpush2.msra.mxu0 %v175
    %253 = vmatprep.subr.mxu0 0.0
    %254 = vmatpush2.msra.mxu0 %v174
    %255 = vmatprep.subr.mxu0 0.0
    %256 = vmatpush2.msra.mxu0 %v173
    %257 = vmatprep.subr.mxu0 0.0
    %258 = vmatpush2.msra.mxu0 %v172
    %259 = vmatprep.mubr.f32.mxu0 %v29
    %260 = vmatmul.mubr.f32.gmra.mxu0 %v28
    %v261 = vpop.f32.mrf.mxu0
    %v262 = vadd.f32 %v193, %v261
    %v263 = vpop.f32.mrf.mxu0
    %264 = vmatprep.mubr.f32.mxu0 %v31
    %265 = vmatmul.mubr.f32.gmra.mxu0 %v30
    %v266 = vpop.f32.mrf.mxu0
    %v267 = vadd.f32 %v193, %v266
    %v268 = vpop.f32.mrf.mxu0
    %269 = vmatprep.mubr.f32.mxu0 %v33
    %270 = vmatmul.mubr.f32.gmra.mxu0 %v32
    %v271 = vpop.f32.mrf.mxu0
    %v272 = vadd.f32 %v193, %v271
    %v273 = vpop.f32.mrf.mxu0
    %274 = vmatprep.mubr.f32.mxu0 %v35
    %275 = vmatmul.mubr.f32.gmra.mxu0 %v34
    %v276 = vpop.f32.mrf.mxu0
    %v277 = vadd.f32 %v193, %v276
    %v278 = vpop.f32.mrf.mxu0
    %279 = vmatprep.mubr.f32.mxu0 %v37
    %280 = vmatmul.mubr.f32.gmra.mxu0 %v36
    %v281 = vpop.f32.mrf.mxu0
    %v282 = vadd.f32 %v193, %v281
    %v283 = vpop.f32.mrf.mxu0
    %284 = vmatprep.mubr.f32.mxu0 %v39
    %285 = vmatmul.mubr.f32.gmra.mxu0 %v38
    %v286 = vpop.f32.mrf.mxu0
    %v287 = vadd.f32 %v193, %v286
    %v288 = vpop.f32.mrf.mxu0
    %289 = vmatprep.mubr.f32.mxu0 %v41
    %290 = vmatmul.mubr.f32.gmra.mxu0 %v40
    %v291 = vpop.f32.mrf.mxu0
    %v292 = vadd.f32 %v193, %v291
    %v293 = vpop.f32.mrf.mxu0
    %294 = vmatprep.mubr.f32.mxu0 %v43
    %295 = vmatmul.mubr.f32.gmra.mxu0 %v42
    %v296 = vpop.f32.mrf.mxu0
    %v297 = vadd.f32 %v193, %v296
    %v298 = vpop.f32.mrf.mxu0
    %299 = vmatprep.mubr.f32.mxu0 %v45
    %300 = vmatmul.mubr.f32.gmra.mxu0 %v44
    %v301 = vpop.f32.mrf.mxu0
    %v302 = vadd.f32 %v193, %v301
    %v303 = vpop.f32.mrf.mxu0
    %304 = vmatprep.mubr.f32.mxu0 %v47
    %305 = vmatmul.mubr.f32.gmra.mxu0 %v46
    %v306 = vpop.f32.mrf.mxu0
    %v307 = vadd.f32 %v193, %v306
    %v308 = vpop.f32.mrf.mxu0
    %309 = vmatprep.mubr.f32.mxu0 %v49
    %310 = vmatmul.mubr.f32.gmra.mxu0 %v48
    %v311 = vpop.f32.mrf.mxu0
    %v312 = vadd.f32 %v193, %v311
    %v313 = vpop.f32.mrf.mxu0
    %314 = vmatprep.mubr.f32.mxu0 %v51
    %315 = vmatmul.mubr.f32.gmra.mxu0 %v50
    %v316 = vpop.f32.mrf.mxu0
    %v317 = vadd.f32 %v193, %v316
    %v318 = vpop.f32.mrf.mxu0
    %319 = vmatprep.mubr.f32.mxu0 %v53
    %320 = vmatmul.mubr.f32.gmra.mxu0 %v52
    %v321 = vpop.f32.mrf.mxu0
    %v322 = vadd.f32 %v193, %v321
    %v323 = vpop.f32.mrf.mxu0
    %324 = vmatprep.mubr.f32.mxu0 %v55
    %325 = vmatmul.mubr.f32.gmra.mxu0 %v54
    %v326 = vpop.f32.mrf.mxu0
    %v327 = vadd.f32 %v193, %v326
    %v328 = vpop.f32.mrf.mxu0
    %329 = vmatprep.mubr.f32.mxu0 %v57
    %330 = vmatmul.mubr.f32.gmra.mxu0 %v56
    %v331 = vpop.f32.mrf.mxu0
    %v332 = vadd.f32 %v193, %v331
    %v333 = vpop.f32.mrf.mxu0
    %334 = vmatprep.mubr.f32.mxu0 %v59
    %335 = vmatmul.mubr.f32.gmra.mxu0 %v58
    %v336 = vpop.f32.mrf.mxu0
    %v337 = vadd.f32 %v193, %v336
    %v338 = vpop.f32.mrf.mxu0
    %339 = vmatprep.mubr.f32.mxu0 %v61
    %340 = vmatmul.mubr.f32.gmra.mxu0 %v60
    %v341 = vpop.f32.mrf.mxu0
    %v342 = vadd.f32 %v193, %v341
    %v343 = vpop.f32.mrf.mxu0
    %344 = vmatprep.mubr.f32.mxu0 %v63
    %345 = vmatmul.mubr.f32.gmra.mxu0 %v62
    %v346 = vpop.f32.mrf.mxu0
    %v347 = vadd.f32 %v193, %v346
    %v348 = vpop.f32.mrf.mxu0
    %349 = vmatprep.mubr.f32.mxu0 %v65
    %350 = vmatmul.mubr.f32.gmra.mxu0 %v64
    %v351 = vpop.f32.mrf.mxu0
    %v352 = vadd.f32 %v193, %v351
    %v353 = vpop.f32.mrf.mxu0
    %354 = vmatprep.mubr.f32.mxu0 %v67
    %355 = vmatmul.mubr.f32.gmra.mxu0 %v66
    %v356 = vpop.f32.mrf.mxu0
    %v357 = vadd.f32 %v193, %v356
    %v358 = vpop.f32.mrf.mxu0
    %359 = vmatprep.mubr.f32.mxu0 %v69
    %360 = vmatmul.mubr.f32.gmra.mxu0 %v68
    %v361 = vpop.f32.mrf.mxu0
    %v362 = vadd.f32 %v193, %v361
    %v363 = vpop.f32.mrf.mxu0
    %364 = vmatprep.mubr.f32.mxu0 %v71
    %365 = vmatmul.mubr.f32.gmra.mxu0 %v70
    %v366 = vpop.f32.mrf.mxu0
    %v367 = vadd.f32 %v193, %v366
    %v368 = vpop.f32.mrf.mxu0
    %369 = vmatprep.mubr.f32.mxu0 %v73
    %370 = vmatmul.mubr.f32.gmra.mxu0 %v72
    %v371 = vpop.f32.mrf.mxu0
    %v372 = vadd.f32 %v193, %v371
    %v373 = vpop.f32.mrf.mxu0
    %374 = vmatprep.mubr.f32.mxu0 %v75
    %375 = vmatmul.mubr.f32.gmra.mxu0 %v74
    %v376 = vpop.f32.mrf.mxu0
    %v377 = vadd.f32 %v193, %v376
    %v378 = vpop.f32.mrf.mxu0
    %379 = vmatprep.mubr.f32.mxu0 %v77
    %380 = vmatmul.mubr.f32.gmra.mxu0 %v76
    %v381 = vpop.f32.mrf.mxu0
    %v382 = vadd.f32 %v193, %v381
    %v383 = vpop.f32.mrf.mxu0
    %384 = vmatprep.mubr.f32.mxu0 %v79
    %385 = vmatmul.mubr.f32.gmra.mxu0 %v78
    %v386 = vpop.f32.mrf.mxu0
    %v387 = vadd.f32 %v193, %v386
    %v388 = vpop.f32.mrf.mxu0
    %389 = vmatprep.mubr.f32.mxu0 %v81
    %390 = vmatmul.mubr.f32.gmra.mxu0 %v80
    %v391 = vpop.f32.mrf.mxu0
    %v392 = vadd.f32 %v193, %v391
    %v393 = vpop.f32.mrf.mxu0
    %394 = vmatprep.mubr.f32.mxu0 %v83
    %395 = vmatmul.mubr.f32.gmra.mxu0 %v82
    %v396 = vpop.f32.mrf.mxu0
    %v397 = vadd.f32 %v193, %v396
    %v398 = vpop.f32.mrf.mxu0
    %399 = vmatprep.mubr.f32.mxu0 %v85
    %400 = vmatmul.mubr.f32.gmra.mxu0 %v84
    %v401 = vpop.f32.mrf.mxu0
    %v402 = vadd.f32 %v193, %v401
    %v403 = vpop.f32.mrf.mxu0
    %404 = vmatprep.mubr.f32.mxu0 %v87
    %405 = vmatmul.mubr.f32.gmra.mxu0 %v86
    %v406 = vpop.f32.mrf.mxu0
    %v407 = vadd.f32 %v193, %v406
    %v408 = vpop.f32.mrf.mxu0
    %409 = vmatprep.mubr.f32.mxu0 %v89
    %410 = vmatmul.mubr.f32.gmra.mxu0 %v88
    %v411 = vpop.f32.mrf.mxu0
    %v412 = vadd.f32 %v193, %v411
    %v413 = vpop.f32.mrf.mxu0
    %414 = vmatprep.mubr.f32.mxu0 %v91
    %415 = vmatmul.mubr.f32.gmra.mxu0 %v90
    %v416 = vpop.f32.mrf.mxu0
    %v417 = vadd.f32 %v193, %v416
    %v418 = vpop.f32.mrf.mxu0
    %419 = vmatprep.mubr.f32.mxu0 %v93
    %420 = vmatmul.mubr.f32.gmra.mxu0 %v92
    %v421 = vpop.f32.mrf.mxu0
    %v422 = vadd.f32 %v193, %v421
    %v423 = vpop.f32.mrf.mxu0
    %424 = vmatprep.mubr.f32.mxu0 %v95
    %425 = vmatmul.mubr.f32.gmra.mxu0 %v94
    %v426 = vpop.f32.mrf.mxu0
    %v427 = vadd.f32 %v193, %v426
    %v428 = vpop.f32.mrf.mxu0
    %429 = vmatprep.mubr.f32.mxu0 %v97
    %430 = vmatmul.mubr.f32.gmra.mxu0 %v96
    %v431 = vpop.f32.mrf.mxu0
    %v432 = vadd.f32 %v193, %v431
    %v433 = vpop.f32.mrf.mxu0
    %434 = vmatprep.mubr.f32.mxu0 %v99
    %435 = vmatmul.mubr.f32.gmra.mxu0 %v98
    %v436 = vpop.f32.mrf.mxu0
    %v437 = vadd.f32 %v193, %v436
    %v438 = vpop.f32.mrf.mxu0
    %439 = vmatprep.mubr.f32.mxu0 %v101
    %440 = vmatmul.mubr.f32.gmra.mxu0 %v100
    %v441 = vpop.f32.mrf.mxu0
    %v442 = vadd.f32 %v193, %v441
    %v443 = vpop.f32.mrf.mxu0
    %444 = vmatprep.mubr.f32.mxu0 %v103
    %445 = vmatmul.mubr.f32.gmra.mxu0 %v102
    %v446 = vpop.f32.mrf.mxu0
    %v447 = vadd.f32 %v193, %v446
    %v448 = vpop.f32.mrf.mxu0
    %449 = vmatprep.mubr.f32.mxu0 %v105
    %450 = vmatmul.mubr.f32.gmra.mxu0 %v104
    %v451 = vpop.f32.mrf.mxu0
    %v452 = vadd.f32 %v193, %v451
    %v453 = vpop.f32.mrf.mxu0
    %454 = vmatprep.mubr.f32.mxu0 %v107
    %455 = vmatmul.mubr.f32.gmra.mxu0 %v106
    %v456 = vpop.f32.mrf.mxu0
    %v457 = vadd.f32 %v193, %v456
    %v458 = vpop.f32.mrf.mxu0
    %459 = vmatprep.mubr.f32.mxu0 %v109
    %460 = vmatmul.mubr.f32.gmra.mxu0 %v108
    %v461 = vpop.f32.mrf.mxu0
    %v462 = vadd.f32 %v193, %v461
    %v463 = vpop.f32.mrf.mxu0
    %464 = vmatprep.mubr.f32.mxu0 %v111
    %465 = vmatmul.mubr.f32.gmra.mxu0 %v110
    %v466 = vpop.f32.mrf.mxu0
    %v467 = vadd.f32 %v193, %v466
    %v468 = vpop.f32.mrf.mxu0
    %469 = vmatprep.mubr.f32.mxu0 %v113
    %470 = vmatmul.mubr.f32.gmra.mxu0 %v112
    %v471 = vpop.f32.mrf.mxu0
    %v472 = vadd.f32 %v193, %v471
    %v473 = vpop.f32.mrf.mxu0
    %474 = vmatprep.mubr.f32.mxu0 %v115
    %475 = vmatmul.mubr.f32.gmra.mxu0 %v114
    %v476 = vpop.f32.mrf.mxu0
    %v477 = vadd.f32 %v193, %v476
    %v478 = vpop.f32.mrf.mxu0
    %479 = vmatprep.mubr.f32.mxu0 %v117
    %480 = vmatmul.mubr.f32.gmra.mxu0 %v116
    %v481 = vpop.f32.mrf.mxu0
    %v482 = vadd.f32 %v193, %v481
    %v483 = vpop.f32.mrf.mxu0
    %484 = vmatprep.mubr.f32.mxu0 %v119
    %485 = vmatmul.mubr.f32.gmra.mxu0 %v118
    %v486 = vpop.f32.mrf.mxu0
    %v487 = vadd.f32 %v193, %v486
    %v488 = vpop.f32.mrf.mxu0
    %489 = vmatprep.mubr.f32.mxu0 %v121
    %490 = vmatmul.mubr.f32.gmra.mxu0 %v120
    %v491 = vpop.f32.mrf.mxu0
    %v492 = vadd.f32 %v193, %v491
    %v493 = vpop.f32.mrf.mxu0
    %494 = vmatprep.mubr.f32.mxu0 %v123
    %495 = vmatmul.mubr.f32.gmra.mxu0 %v122
    %v496 = vpop.f32.mrf.mxu0
    %v497 = vadd.f32 %v193, %v496
    %v498 = vpop.f32.mrf.mxu0
    %499 = vmatprep.mubr.f32.mxu0 %v125
    %500 = vmatmul.mubr.f32.gmra.mxu0 %v124
    %v501 = vpop.f32.mrf.mxu0
    %v502 = vadd.f32 %v193, %v501
    %v503 = vpop.f32.mrf.mxu0
    %504 = vmatprep.mubr.f32.mxu0 %v127
    %505 = vmatmul.mubr.f32.gmra.mxu0 %v126
    %v506 = vpop.f32.mrf.mxu0
    %v507 = vadd.f32 %v193, %v506
    %v508 = vpop.f32.mrf.mxu0
    %509 = vmatprep.mubr.f32.mxu0 %v129
    %510 = vmatmul.mubr.f32.gmra.mxu0 %v128
    %v511 = vpop.f32.mrf.mxu0
    %v512 = vadd.f32 %v193, %v511
    %v513 = vpop.f32.mrf.mxu0
    %514 = vmatprep.mubr.f32.mxu0 %v131
    %515 = vmatmul.mubr.f32.gmra.mxu0 %v130
    %v516 = vpop.f32.mrf.mxu0
    %v517 = vadd.f32 %v193, %v516
    %v518 = vpop.f32.mrf.mxu0
    %519 = vmatprep.mubr.f32.mxu0 %v133
    %520 = vmatmul.mubr.f32.gmra.mxu0 %v132
    %v521 = vpop.f32.mrf.mxu0
    %v522 = vadd.f32 %v193, %v521
    %v523 = vpop.f32.mrf.mxu0
    %524 = vmatprep.mubr.f32.mxu0 %v135
    %525 = vmatmul.mubr.f32.gmra.mxu0 %v134
    %v526 = vpop.f32.mrf.mxu0
    %v527 = vadd.f32 %v193, %v526
    %v528 = vpop.f32.mrf.mxu0
    %529 = vmatprep.mubr.f32.mxu0 %v137
    %530 = vmatmul.mubr.f32.gmra.mxu0 %v136
    %v531 = vpop.f32.mrf.mxu0
    %v532 = vadd.f32 %v193, %v531
    %v533 = vpop.f32.mrf.mxu0
    %534 = vmatprep.mubr.f32.mxu0 %v139
    %535 = vmatmul.mubr.f32.gmra.mxu0 %v138
    %v536 = vpop.f32.mrf.mxu0
    %v537 = vadd.f32 %v193, %v536
    %v538 = vpop.f32.mrf.mxu0
    %539 = vmatprep.mubr.f32.mxu0 %v141
    %540 = vmatmul.mubr.f32.gmra.mxu0 %v140
    %v541 = vpop.f32.mrf.mxu0
    %v542 = vadd.f32 %v193, %v541
    %v543 = vpop.f32.mrf.mxu0
    %544 = vmatprep.mubr.f32.mxu0 %v143
    %545 = vmatmul.mubr.f32.gmra.mxu0 %v142
    %v546 = vpop.f32.mrf.mxu0
    %v547 = vadd.f32 %v193, %v546
    %v548 = vpop.f32.mrf.mxu0
    %549 = vmatprep.mubr.f32.mxu0 %v145
    %550 = vmatmul.mubr.f32.gmra.mxu0 %v144
    %v551 = vpop.f32.mrf.mxu0
    %v552 = vadd.f32 %v193, %v551
    %v553 = vpop.f32.mrf.mxu0
    %554 = vmatprep.mubr.f32.mxu0 %v147
    %555 = vmatmul.mubr.f32.gmra.mxu0 %v146
    %v556 = vpop.f32.mrf.mxu0
    %v557 = vadd.f32 %v193, %v556
    %v558 = vpop.f32.mrf.mxu0
    %559 = vmatprep.mubr.f32.mxu0 %v149
    %560 = vmatmul.mubr.f32.gmra.mxu0 %v148
    %v561 = vpop.f32.mrf.mxu0
    %v562 = vadd.f32 %v193, %v561
    %v563 = vpop.f32.mrf.mxu0
    %564 = vmatprep.mubr.f32.mxu0 %v151
    %565 = vmatmul.mubr.f32.gmra.mxu0 %v150
    %v566 = vpop.f32.mrf.mxu0
    %v567 = vadd.f32 %v193, %v566
    %v568 = vpop.f32.mrf.mxu0
    %569 = vmatprep.mubr.f32.mxu0 %v153
    %570 = vmatmul.mubr.f32.gmra.mxu0 %v152
    %v571 = vpop.f32.mrf.mxu0
    %v572 = vadd.f32 %v193, %v571
    %v573 = vpop.f32.mrf.mxu0
    %574 = vmatprep.mubr.f32.mxu0 %v155
    %575 = vmatmul.mubr.f32.gmra.mxu0 %v154
    %v576 = vpop.f32.mrf.mxu0
    %v577 = vadd.f32 %v193, %v576
    %v578 = vpop.f32.mrf.mxu0
    %579 = vdwg.mxu0
    %v580 = vmax.f32 %v262, 0.0
    %v581 = vmax.f32 %v267, 0.0
    %v582 = vmax.f32 %v272, 0.0
    %v583 = vmax.f32 %v277, 0.0
    %v584 = vmax.f32 %v282, 0.0
    %v585 = vmax.f32 %v287, 0.0
    %v586 = vmax.f32 %v292, 0.0
    %v587 = vmax.f32 %v297, 0.0
    %v588 = vmax.f32 %v302, 0.0
    %v589 = vmax.f32 %v307, 0.0
    %v590 = vmax.f32 %v312, 0.0
    %v591 = vmax.f32 %v317, 0.0
    %v592 = vmax.f32 %v322, 0.0
    %v593 = vmax.f32 %v327, 0.0
    %v594 = vmax.f32 %v332, 0.0
    %v595 = vmax.f32 %v337, 0.0
    %v596 = vmax.f32 %v342, 0.0
    %v597 = vmax.f32 %v347, 0.0
    %v598 = vmax.f32 %v352, 0.0
    %v599 = vmax.f32 %v357, 0.0
    %v600 = vmax.f32 %v362, 0.0
    %v601 = vmax.f32 %v367, 0.0
    %v602 = vmax.f32 %v372, 0.0
    %v603 = vmax.f32 %v377, 0.0
    %v604 = vmax.f32 %v382, 0.0
    %v605 = vmax.f32 %v387, 0.0
    %v606 = vmax.f32 %v392, 0.0
    %v607 = vmax.f32 %v397, 0.0
    %v608 = vmax.f32 %v402, 0.0
    %v609 = vmax.f32 %v407, 0.0
    %v610 = vmax.f32 %v412, 0.0
    %v611 = vmax.f32 %v417, 0.0
    %v612 = vmax.f32 %v422, 0.0
    %v613 = vmax.f32 %v427, 0.0
    %v614 = vmax.f32 %v432, 0.0
    %v615 = vmax.f32 %v437, 0.0
    %v616 = vmax.f32 %v442, 0.0
    %v617 = vmax.f32 %v447, 0.0
    %v618 = vmax.f32 %v452, 0.0
    %v619 = vmax.f32 %v457, 0.0
    %v620 = vmax.f32 %v462, 0.0
    %v621 = vmax.f32 %v467, 0.0
    %v622 = vmax.f32 %v472, 0.0
    %v623 = vmax.f32 %v477, 0.0
    %v624 = vmax.f32 %v482, 0.0
    %v625 = vmax.f32 %v487, 0.0
    %v626 = vmax.f32 %v492, 0.0
    %v627 = vmax.f32 %v497, 0.0
    %v628 = vmax.f32 %v502, 0.0
    %v629 = vmax.f32 %v507, 0.0
    %v630 = vmax.f32 %v512, 0.0
    %v631 = vmax.f32 %v517, 0.0
    %v632 = vmax.f32 %v522, 0.0
    %v633 = vmax.f32 %v527, 0.0
    %v634 = vmax.f32 %v532, 0.0
    %v635 = vmax.f32 %v537, 0.0
    %v636 = vmax.f32 %v542, 0.0
    %v637 = vmax.f32 %v547, 0.0
    %v638 = vmax.f32 %v552, 0.0
    %v639 = vmax.f32 %v557, 0.0
    %v640 = vmax.f32 %v562, 0.0
    %v641 = vmax.f32 %v567, 0.0
    %v642 = vmax.f32 %v572, 0.0
    %v643 = vmax.f32 %v577, 0.0
    %vm644 = vcmask 392192
    %645 = vst.msk [vmem:[#allocation2] sm:$0xff] %vm644, 0.0
    %646 = vst.msk [vmem:[#allocation2 + $0x8] sm:$0xff] %vm644, 0.0
    %vm647 = vcmask 385024
    %648 = vst.msk [vmem:[#allocation2 + $0x10] sm:$0x1] %vm647, 0.0
    %649 = vst.msk [vmem:[#allocation2 + $0x198] sm:$0xff] %vm644, 0.0
    %650 = vst.msk [vmem:[#allocation2 + $0x1a0] sm:$0xff] %vm644, 0.0
    %651 = vst.msk [vmem:[#allocation2 + $0x1a8] sm:$0x1] %vm647, 0.0
    %652 = vst.msk [vmem:[#allocation2] sm:$0x1] %vm647, 0.0
    %653 = vst.msk [vmem:[#allocation2 + $0x18] sm:$0x1] %vm647, 0.0
    %654 = vst.msk [vmem:[#allocation2 + $0x30] sm:$0x1] %vm647, 0.0
    %655 = vst.msk [vmem:[#allocation2 + $0x48] sm:$0x1] %vm647, 0.0
    %656 = vst.msk [vmem:[#allocation2 + $0x60] sm:$0x1] %vm647, 0.0
    %657 = vst.msk [vmem:[#allocation2 + $0x78] sm:$0x1] %vm647, 0.0
    %658 = vst.msk [vmem:[#allocation2 + $0x90] sm:$0x1] %vm647, 0.0
    %659 = vst.msk [vmem:[#allocation2 + $0xa8] sm:$0x1] %vm647, 0.0
    %660 = vst.msk [vmem:[#allocation2 + $0xc0] sm:$0x1] %vm647, 0.0
    %661 = vst.msk [vmem:[#allocation2 + $0xd8] sm:$0x1] %vm647, 0.0
    %662 = vst.msk [vmem:[#allocation2 + $0xf0] sm:$0x1] %vm647, 0.0
    %663 = vst.msk [vmem:[#allocation2 + $0x108] sm:$0x1] %vm647, 0.0
    %664 = vst.msk [vmem:[#allocation2 + $0x120] sm:$0x1] %vm647, 0.0
    %665 = vst.msk [vmem:[#allocation2 + $0x138] sm:$0x1] %vm647, 0.0
    %666 = vst.msk [vmem:[#allocation2 + $0x150] sm:$0x1] %vm647, 0.0
    %667 = vst.msk [vmem:[#allocation2 + $0x168] sm:$0x1] %vm647, 0.0
    %668 = vst.msk [vmem:[#allocation2 + $0x180] sm:$0x1] %vm647, 0.0
    %669 = vst.msk [vmem:[#allocation2 + $0x198] sm:$0x1] %vm647, 0.0
    %670 = vst.msk [vmem:[#allocation2 + $0x1b0] sm:$0x1] %vm647, 0.0
    %671 = vst.msk [vmem:[#allocation2 + $0x1c8] sm:$0x1] %vm647, 0.0
    %672 = vst.msk [vmem:[#allocation2 + $0x1e0] sm:$0x1] %vm647, 0.0
    %673 = vst.msk [vmem:[#allocation2 + $0x1f8] sm:$0x1] %vm647, 0.0
    %674 = vst.msk [vmem:[#allocation2 + $0x210] sm:$0x1] %vm647, 0.0
    %675 = vst.msk [vmem:[#allocation2 + $0x228] sm:$0x1] %vm647, 0.0
    %676 = vst.msk [vmem:[#allocation2 + $0x240] sm:$0x1] %vm647, 0.0
    %677 = vst.msk [vmem:[#allocation2 + $0x258] sm:$0x1] %vm647, 0.0
    %678 = vst.msk [vmem:[#allocation2 + $0x270] sm:$0x1] %vm647, 0.0
    %679 = vst.msk [vmem:[#allocation2 + $0x288] sm:$0x1] %vm647, 0.0
    %680 = vst.msk [vmem:[#allocation2 + $0x2a0] sm:$0x1] %vm647, 0.0
    %681 = vst.msk [vmem:[#allocation2 + $0x2b8] sm:$0x1] %vm647, 0.0
    %682 = vst.msk [vmem:[#allocation2 + $0x2d0] sm:$0x1] %vm647, 0.0
    %683 = vst.msk [vmem:[#allocation2 + $0x2e8] sm:$0x1] %vm647, 0.0
    %684 = vst.msk [vmem:[#allocation2 + $0x300] sm:$0x1] %vm647, 0.0
    %685 = vst.msk [vmem:[#allocation2 + $0x318] sm:$0x1] %vm647, 0.0
    %s686 = scalar_lea.vmem [#allocation2], 24
    %687 = vst.msk [vmem:[%s686 + $0x1] sm:$0xff] %vm644, %v580
    %688 = vst.msk [vmem:[%s686 + $0x9] sm:$0xff] %vm644, %v581
    %689 = vst.msk [vmem:[%s686 + $0x19] sm:$0xff] %vm644, %v582
    %690 = vst.msk [vmem:[%s686 + $0x21] sm:$0xff] %vm644, %v583
    %691 = vst.msk [vmem:[%s686 + $0x31] sm:$0xff] %vm644, %v584
    %692 = vst.msk [vmem:[%s686 + $0x39] sm:$0xff] %vm644, %v585
    %693 = vst.msk [vmem:[%s686 + $0x49] sm:$0xff] %vm644, %v586
    %694 = vst.msk [vmem:[%s686 + $0x51] sm:$0xff] %vm644, %v587
    %695 = vst.msk [vmem:[%s686 + $0x61] sm:$0xff] %vm644, %v588
    %696 = vst.msk [vmem:[%s686 + $0x69] sm:$0xff] %vm644, %v589
    %697 = vst.msk [vmem:[%s686 + $0x79] sm:$0xff] %vm644, %v590
    %698 = vst.msk [vmem:[%s686 + $0x81] sm:$0xff] %vm644, %v591
    %699 = vst.msk [vmem:[%s686 + $0x91] sm:$0xff] %vm644, %v592
    %700 = vst.msk [vmem:[%s686 + $0x99] sm:$0xff] %vm644, %v593
    %701 = vst.msk [vmem:[%s686 + $0xa9] sm:$0xff] %vm644, %v594
    %702 = vst.msk [vmem:[%s686 + $0xb1] sm:$0xff] %vm644, %v595
    %703 = vst.msk [vmem:[%s686 + $0xc1] sm:$0xff] %vm644, %v596
    %704 = vst.msk [vmem:[%s686 + $0xc9] sm:$0xff] %vm644, %v597
    %705 = vst.msk [vmem:[%s686 + $0xd9] sm:$0xff] %vm644, %v598
    %706 = vst.msk [vmem:[%s686 + $0xe1] sm:$0xff] %vm644, %v599
    %707 = vst.msk [vmem:[%s686 + $0xf1] sm:$0xff] %vm644, %v600
    %708 = vst.msk [vmem:[%s686 + $0xf9] sm:$0xff] %vm644, %v601
    %709 = vst.msk [vmem:[%s686 + $0x109] sm:$0xff] %vm644, %v602
    %710 = vst.msk [vmem:[%s686 + $0x111] sm:$0xff] %vm644, %v603
    %711 = vst.msk [vmem:[%s686 + $0x121] sm:$0xff] %vm644, %v604
    %712 = vst.msk [vmem:[%s686 + $0x129] sm:$0xff] %vm644, %v605
    %713 = vst.msk [vmem:[%s686 + $0x139] sm:$0xff] %vm644, %v606
    %714 = vst.msk [vmem:[%s686 + $0x141] sm:$0xff] %vm644, %v607
    %715 = vst.msk [vmem:[%s686 + $0x151] sm:$0xff] %vm644, %v608
    %716 = vst.msk [vmem:[%s686 + $0x159] sm:$0xff] %vm644, %v609
    %717 = vst.msk [vmem:[%s686 + $0x169] sm:$0xff] %vm644, %v610
    %718 = vst.msk [vmem:[%s686 + $0x171] sm:$0xff] %vm644, %v611
    %719 = vst.msk [vmem:[%s686 + $0x199] sm:$0xff] %vm644, %v612
    %720 = vst.msk [vmem:[%s686 + $0x1a1] sm:$0xff] %vm644, %v613
    %721 = vst.msk [vmem:[%s686 + $0x1b1] sm:$0xff] %vm644, %v614
    %722 = vst.msk [vmem:[%s686 + $0x1b9] sm:$0xff] %vm644, %v615
    %723 = vst.msk [vmem:[%s686 + $0x1c9] sm:$0xff] %vm644, %v616
    %724 = vst.msk [vmem:[%s686 + $0x1d1] sm:$0xff] %vm644, %v617
    %725 = vst.msk [vmem:[%s686 + $0x1e1] sm:$0xff] %vm644, %v618
    %726 = vst.msk [vmem:[%s686 + $0x1e9] sm:$0xff] %vm644, %v619
    %727 = vst.msk [vmem:[%s686 + $0x1f9] sm:$0xff] %vm644, %v620
    %728 = vst.msk [vmem:[%s686 + $0x201] sm:$0xff] %vm644, %v621
    %729 = vst.msk [vmem:[%s686 + $0x211] sm:$0xff] %vm644, %v622
    %730 = vst.msk [vmem:[%s686 + $0x219] sm:$0xff] %vm644, %v623
    %731 = vst.msk [vmem:[%s686 + $0x229] sm:$0xff] %vm644, %v624
    %732 = vst.msk [vmem:[%s686 + $0x231] sm:$0xff] %vm644, %v625
    %733 = vst.msk [vmem:[%s686 + $0x241] sm:$0xff] %vm644, %v626
    %734 = vst.msk [vmem:[%s686 + $0x249] sm:$0xff] %vm644, %v627
    %735 = vst.msk [vmem:[%s686 + $0x259] sm:$0xff] %vm644, %v628
    %736 = vst.msk [vmem:[%s686 + $0x261] sm:$0xff] %vm644, %v629
    %737 = vst.msk [vmem:[%s686 + $0x271] sm:$0xff] %vm644, %v630
    %738 = vst.msk [vmem:[%s686 + $0x279] sm:$0xff] %vm644, %v631
    %739 = vst.msk [vmem:[%s686 + $0x289] sm:$0xff] %vm644, %v632
    %740 = vst.msk [vmem:[%s686 + $0x291] sm:$0xff] %vm644, %v633
    %741 = vst.msk [vmem:[%s686 + $0x2a1] sm:$0xff] %vm644, %v634
    %742 = vst.msk [vmem:[%s686 + $0x2a9] sm:$0xff] %vm644, %v635
    %743 = vst.msk [vmem:[%s686 + $0x2b9] sm:$0xff] %vm644, %v636
    %744 = vst.msk [vmem:[%s686 + $0x2c1] sm:$0xff] %vm644, %v637
    %745 = vst.msk [vmem:[%s686 + $0x2d1] sm:$0xff] %vm644, %v638
    %746 = vst.msk [vmem:[%s686 + $0x2d9] sm:$0xff] %vm644, %v639
    %747 = vst.msk [vmem:[%s686 + $0x2e9] sm:$0xff] %vm644, %v640
    %748 = vst.msk [vmem:[%s686 + $0x2f1] sm:$0xff] %vm644, %v641
    %749 = vst.msk [vmem:[%s686 + $0x301] sm:$0xff] %vm644, %v642
    %750 = vst.msk [vmem:[%s686 + $0x309] sm:$0xff] %vm644, %v643
    %v751 = vld [vmem:[#allocation2] sm:$0xff]
    %v752 = vld [vmem:[#allocation2 + $0x8] sm:$0xff]
    %v753 = vld [vmem:[#allocation2 + $0x10] sm:$0x1]
    %v754 = vld [vmem:[#allocation2 + $0x18] sm:$0xff]
    %v755 = vld [vmem:[#allocation2 + $0x20] sm:$0xff]
    %v756 = vld [vmem:[#allocation2 + $0x28] sm:$0x1]
    %v757 = vld [vmem:[#allocation2 + $0x30] sm:$0xff]
    %v758 = vld [vmem:[#allocation2 + $0x38] sm:$0xff]
    %v759 = vld [vmem:[#allocation2 + $0x40] sm:$0x1]
    %v760 = vld [vmem:[#allocation2 + $0x48] sm:$0xff]
    %v761 = vld [vmem:[#allocation2 + $0x50] sm:$0xff]
    %v762 = vld [vmem:[#allocation2 + $0x58] sm:$0x1]
    %v763 = vld [vmem:[#allocation2 + $0x60] sm:$0xff]
    %v764 = vld [vmem:[#allocation2 + $0x68] sm:$0xff]
    %v765 = vld [vmem:[#allocation2 + $0x70] sm:$0x1]
    %v766 = vld [vmem:[#allocation2 + $0x78] sm:$0xff]
    %v767 = vld [vmem:[#allocation2 + $0x80] sm:$0xff]
    %v768 = vld [vmem:[#allocation2 + $0x88] sm:$0x1]
    %v769 = vld [vmem:[#allocation2 + $0x90] sm:$0xff]
    %v770 = vld [vmem:[#allocation2 + $0x98] sm:$0xff]
    %v771 = vld [vmem:[#allocation2 + $0xa0] sm:$0x1]
    %v772 = vld [vmem:[#allocation2 + $0xa8] sm:$0xff]
    %v773 = vld [vmem:[#allocation2 + $0xb0] sm:$0xff]
    %v774 = vld [vmem:[#allocation2 + $0xb8] sm:$0x1]
    %v775 = vld [vmem:[#allocation2 + $0xc0] sm:$0xff]
    %v776 = vld [vmem:[#allocation2 + $0xc8] sm:$0xff]
    %v777 = vld [vmem:[#allocation2 + $0xd0] sm:$0x1]
    %v778 = vld [vmem:[#allocation2 + $0xd8] sm:$0xff]
    %v779 = vld [vmem:[#allocation2 + $0xe0] sm:$0xff]
    %v780 = vld [vmem:[#allocation2 + $0xe8] sm:$0x1]
    %v781 = vld [vmem:[#allocation2 + $0xf0] sm:$0xff]
    %v782 = vld [vmem:[#allocation2 + $0xf8] sm:$0xff]
    %v783 = vld [vmem:[#allocation2 + $0x100] sm:$0x1]
    %v784 = vld [vmem:[#allocation2 + $0x108] sm:$0xff]
    %v785 = vld [vmem:[#allocation2 + $0x110] sm:$0xff]
    %v786 = vld [vmem:[#allocation2 + $0x118] sm:$0x1]
    %v787 = vld [vmem:[#allocation2 + $0x120] sm:$0xff]
    %v788 = vld [vmem:[#allocation2 + $0x128] sm:$0xff]
    %v789 = vld [vmem:[#allocation2 + $0x130] sm:$0x1]
    %v790 = vld [vmem:[#allocation2 + $0x138] sm:$0xff]
    %v791 = vld [vmem:[#allocation2 + $0x140] sm:$0xff]
    %v792 = vld [vmem:[#allocation2 + $0x148] sm:$0x1]
    %v793 = vld [vmem:[#allocation2 + $0x150] sm:$0xff]
    %v794 = vld [vmem:[#allocation2 + $0x158] sm:$0xff]
    %v795 = vld [vmem:[#allocation2 + $0x160] sm:$0x1]
    %v796 = vld [vmem:[#allocation2 + $0x168] sm:$0xff]
    %v797 = vld [vmem:[#allocation2 + $0x170] sm:$0xff]
    %v798 = vld [vmem:[#allocation2 + $0x178] sm:$0x1]
    %v799 = vld [vmem:[#allocation2 + $0x198] sm:$0xff]
    %v800 = vld [vmem:[#allocation2 + $0x1a0] sm:$0xff]
    %v801 = vld [vmem:[#allocation2 + $0x1a8] sm:$0x1]
    %v802 = vld [vmem:[#allocation2 + $0x1b0] sm:$0xff]
    %v803 = vld [vmem:[#allocation2 + $0x1b8] sm:$0xff]
    %v804 = vld [vmem:[#allocation2 + $0x1c0] sm:$0x1]
    %v805 = vld [vmem:[#allocation2 + $0x1c8] sm:$0xff]
    %v806 = vld [vmem:[#allocation2 + $0x1d0] sm:$0xff]
    %v807 = vld [vmem:[#allocation2 + $0x1d8] sm:$0x1]
    %v808 = vld [vmem:[#allocation2 + $0x1e0] sm:$0xff]
    %v809 = vld [vmem:[#allocation2 + $0x1e8] sm:$0xff]
    %v810 = vld [vmem:[#allocation2 + $0x1f0] sm:$0x1]
    %v811 = vld [vmem:[#allocation2 + $0x1f8] sm:$0xff]
    %v812 = vld [vmem:[#allocation2 + $0x200] sm:$0xff]
    %v813 = vld [vmem:[#allocation2 + $0x208] sm:$0x1]
    %v814 = vld [vmem:[#allocation2 + $0x210] sm:$0xff]
    %v815 = vld [vmem:[#allocation2 + $0x218] sm:$0xff]
    %v816 = vld [vmem:[#allocation2 + $0x220] sm:$0x1]
    %v817 = vld [vmem:[#allocation2 + $0x228] sm:$0xff]
    %v818 = vld [vmem:[#allocation2 + $0x230] sm:$0xff]
    %v819 = vld [vmem:[#allocation2 + $0x238] sm:$0x1]
    %v820 = vld [vmem:[#allocation2 + $0x240] sm:$0xff]
    %v821 = vld [vmem:[#allocation2 + $0x248] sm:$0xff]
    %v822 = vld [vmem:[#allocation2 + $0x250] sm:$0x1]
    %v823 = vld [vmem:[#allocation2 + $0x258] sm:$0xff]
    %v824 = vld [vmem:[#allocation2 + $0x260] sm:$0xff]
    %v825 = vld [vmem:[#allocation2 + $0x268] sm:$0x1]
    %v826 = vld [vmem:[#allocation2 + $0x270] sm:$0xff]
    %v827 = vld [vmem:[#allocation2 + $0x278] sm:$0xff]
    %v828 = vld [vmem:[#allocation2 + $0x280] sm:$0x1]
    %v829 = vld [vmem:[#allocation2 + $0x288] sm:$0xff]
    %v830 = vld [vmem:[#allocation2 + $0x290] sm:$0xff]
    %v831 = vld [vmem:[#allocation2 + $0x298] sm:$0x1]
    %v832 = vld [vmem:[#allocation2 + $0x2a0] sm:$0xff]
    %v833 = vld [vmem:[#allocation2 + $0x2a8] sm:$0xff]
    %v834 = vld [vmem:[#allocation2 + $0x2b0] sm:$0x1]
    %v835 = vld [vmem:[#allocation2 + $0x2b8] sm:$0xff]
    %v836 = vld [vmem:[#allocation2 + $0x2c0] sm:$0xff]
    %v837 = vld [vmem:[#allocation2 + $0x2c8] sm:$0x1]
    %v838 = vld [vmem:[#allocation2 + $0x2d0] sm:$0xff]
    %v839 = vld [vmem:[#allocation2 + $0x2d8] sm:$0xff]
    %v840 = vld [vmem:[#allocation2 + $0x2e0] sm:$0x1]
    %v841 = vld [vmem:[#allocation2 + $0x2e8] sm:$0xff]
    %v842 = vld [vmem:[#allocation2 + $0x2f0] sm:$0xff]
    %v843 = vld [vmem:[#allocation2 + $0x2f8] sm:$0x1]
    %v844 = vld [vmem:[#allocation2 + $0x300] sm:$0xff]
    %v845 = vld [vmem:[#allocation2 + $0x308] sm:$0xff]
    %v846 = vld [vmem:[#allocation2 + $0x310] sm:$0x1]
    %v847 = vld [vmem:[%s686 + $0x18] sm:$0xff]
    %v848 = vld [vmem:[%s686 + $0x20] sm:$0xff]
    %v849 = vld [vmem:[%s686 + $0x28] sm:$0x1]
    %v850 = vld [vmem:[%s686 + $0x48] sm:$0xff]
    %v851 = vld [vmem:[%s686 + $0x50] sm:$0xff]
    %v852 = vld [vmem:[%s686 + $0x58] sm:$0x1]
    %v853 = vld [vmem:[%s686 + $0x78] sm:$0xff]
    %v854 = vld [vmem:[%s686 + $0x80] sm:$0xff]
    %v855 = vld [vmem:[%s686 + $0x88] sm:$0x1]
    %v856 = vld [vmem:[%s686 + $0xa8] sm:$0xff]
    %v857 = vld [vmem:[%s686 + $0xb0] sm:$0xff]
    %v858 = vld [vmem:[%s686 + $0xb8] sm:$0x1]
    %v859 = vld [vmem:[%s686 + $0xd8] sm:$0xff]
    %v860 = vld [vmem:[%s686 + $0xe0] sm:$0xff]
    %v861 = vld [vmem:[%s686 + $0xe8] sm:$0x1]
    %v862 = vld [vmem:[%s686 + $0x108] sm:$0xff]
    %v863 = vld [vmem:[%s686 + $0x110] sm:$0xff]
    %v864 = vld [vmem:[%s686 + $0x118] sm:$0x1]
    %v865 = vld [vmem:[%s686 + $0x138] sm:$0xff]
    %v866 = vld [vmem:[%s686 + $0x140] sm:$0xff]
    %v867 = vld [vmem:[%s686 + $0x148] sm:$0x1]
    %v868 = vld [vmem:[%s686 + $0x168] sm:$0xff]
    %v869 = vld [vmem:[%s686 + $0x170] sm:$0xff]
    %v870 = vld [vmem:[%s686 + $0x178] sm:$0x1]
    %v871 = vld [vmem:[%s686 + $0x1b0] sm:$0xff]
    %v872 = vld [vmem:[%s686 + $0x1b8] sm:$0xff]
    %v873 = vld [vmem:[%s686 + $0x1c0] sm:$0x1]
    %v874 = vld [vmem:[%s686 + $0x1e0] sm:$0xff]
    %v875 = vld [vmem:[%s686 + $0x1e8] sm:$0xff]
    %v876 = vld [vmem:[%s686 + $0x1f0] sm:$0x1]
    %v877 = vld [vmem:[%s686 + $0x210] sm:$0xff]
    %v878 = vld [vmem:[%s686 + $0x218] sm:$0xff]
    %v879 = vld [vmem:[%s686 + $0x220] sm:$0x1]
    %v880 = vld [vmem:[%s686 + $0x240] sm:$0xff]
    %v881 = vld [vmem:[%s686 + $0x248] sm:$0xff]
    %v882 = vld [vmem:[%s686 + $0x250] sm:$0x1]
    %v883 = vld [vmem:[%s686 + $0x270] sm:$0xff]
    %v884 = vld [vmem:[%s686 + $0x278] sm:$0xff]
    %v885 = vld [vmem:[%s686 + $0x280] sm:$0x1]
    %v886 = vld [vmem:[%s686 + $0x2a0] sm:$0xff]
    %v887 = vld [vmem:[%s686 + $0x2a8] sm:$0xff]
    %v888 = vld [vmem:[%s686 + $0x2b0] sm:$0x1]
    %v889 = vld [vmem:[%s686 + $0x2d0] sm:$0xff]
    %v890 = vld [vmem:[%s686 + $0x2d8] sm:$0xff]
    %v891 = vld [vmem:[%s686 + $0x2e0] sm:$0x1]
    %v892 = vld [vmem:[%s686 + $0x300] sm:$0xff]
    %v893 = vld [vmem:[%s686 + $0x308] sm:$0xff]
    %v894 = vld [vmem:[%s686 + $0x310] sm:$0x1]
    %v895 = vmax.f32 %v751, %v754
    %v896 = vmax.f32 %v752, %v755
    %v897 = vmax.f32 %v753, %v756
    %v898 = vmax.f32 %v757, %v760
    %v899 = vmax.f32 %v758, %v761
    %v900 = vmax.f32 %v759, %v762
    %v901 = vmax.f32 %v763, %v766
    %v902 = vmax.f32 %v764, %v767
    %v903 = vmax.f32 %v765, %v768
    %v904 = vmax.f32 %v769, %v772
    %v905 = vmax.f32 %v770, %v773
    %v906 = vmax.f32 %v771, %v774
    %v907 = vmax.f32 %v775, %v778
    %v908 = vmax.f32 %v776, %v779
    %v909 = vmax.f32 %v777, %v780
    %v910 = vmax.f32 %v781, %v784
    %v911 = vmax.f32 %v782, %v785
    %v912 = vmax.f32 %v783, %v786
    %v913 = vmax.f32 %v787, %v790
    %v914 = vmax.f32 %v788, %v791
    %v915 = vmax.f32 %v789, %v792
    %v916 = vmax.f32 %v793, %v796
    %v917 = vmax.f32 %v794, %v797
    %v918 = vmax.f32 %v795, %v798
    %v919 = vmax.f32 %v799, %v802
    %v920 = vmax.f32 %v800, %v803
    %v921 = vmax.f32 %v801, %v804
    %v922 = vmax.f32 %v805, %v808
    %v923 = vmax.f32 %v806, %v809
    %v924 = vmax.f32 %v807, %v810
    %v925 = vmax.f32 %v811, %v814
    %v926 = vmax.f32 %v812, %v815
    %v927 = vmax.f32 %v813, %v816
    %v928 = vmax.f32 %v817, %v820
    %v929 = vmax.f32 %v818, %v821
    %v930 = vmax.f32 %v819, %v822
    %v931 = vmax.f32 %v823, %v826
    %v932 = vmax.f32 %v824, %v827
    %v933 = vmax.f32 %v825, %v828
    %v934 = vmax.f32 %v829, %v832
    %v935 = vmax.f32 %v830, %v833
    %v936 = vmax.f32 %v831, %v834
    %v937 = vmax.f32 %v835, %v838
    %v938 = vmax.f32 %v836, %v839
    %v939 = vmax.f32 %v837, %v840
    %v940 = vmax.f32 %v841, %v844
    %v941 = vmax.f32 %v842, %v845
    %v942 = vmax.f32 %v843, %v846
    %v943 = vmax.f32 %v895, %v847
    %v944 = vmax.f32 %v896, %v848
    %v945 = vmax.f32 %v897, %v849
    %v946 = vmax.f32 %v898, %v850
    %v947 = vmax.f32 %v899, %v851
    %v948 = vmax.f32 %v900, %v852
    %v949 = vmax.f32 %v901, %v853
    %v950 = vmax.f32 %v902, %v854
    %v951 = vmax.f32 %v903, %v855
    %v952 = vmax.f32 %v904, %v856
    %v953 = vmax.f32 %v905, %v857
    %v954 = vmax.f32 %v906, %v858
    %v955 = vmax.f32 %v907, %v859
    %v956 = vmax.f32 %v908, %v860
    %v957 = vmax.f32 %v909, %v861
    %v958 = vmax.f32 %v910, %v862
    %v959 = vmax.f32 %v911, %v863
    %v960 = vmax.f32 %v912, %v864
    %v961 = vmax.f32 %v913, %v865
    %v962 = vmax.f32 %v914, %v866
    %v963 = vmax.f32 %v915, %v867
    %v964 = vmax.f32 %v916, %v868
    %v965 = vmax.f32 %v917, %v869
    %v966 = vmax.f32 %v918, %v870
    %v967 = vmax.f32 %v919, %v871
    %v968 = vmax.f32 %v920, %v872
    %v969 = vmax.f32 %v921, %v873
    %v970 = vmax.f32 %v922, %v874
    %v971 = vmax.f32 %v923, %v875
    %v972 = vmax.f32 %v924, %v876
    %v973 = vmax.f32 %v925, %v877
    %v974 = vmax.f32 %v926, %v878
    %v975 = vmax.f32 %v927, %v879
    %v976 = vmax.f32 %v928, %v880
    %v977 = vmax.f32 %v929, %v881
    %v978 = vmax.f32 %v930, %v882
    %v979 = vmax.f32 %v931, %v883
    %v980 = vmax.f32 %v932, %v884
    %v981 = vmax.f32 %v933, %v885
    %v982 = vmax.f32 %v934, %v886
    %v983 = vmax.f32 %v935, %v887
    %v984 = vmax.f32 %v936, %v888
    %v985 = vmax.f32 %v937, %v889
    %v986 = vmax.f32 %v938, %v890
    %v987 = vmax.f32 %v939, %v891
    %v988 = vmax.f32 %v940, %v892
    %v989 = vmax.f32 %v941, %v893
    %v990 = vmax.f32 %v942, %v894
    %v1007 = vrot.slane %v943, 1
    %v1008 = vrot.slane %v946, 1
    %v1009 = vrot.slane %v949, 1
    %v1010 = vrot.slane %v952, 1
    %v1011 = vrot.slane %v955, 1
    %v1012 = vrot.slane %v958, 1
    %v1013 = vrot.slane %v961, 1
    %v1014 = vrot.slane %v964, 1
    %v1015 = vrot.slane %v967, 1
    %v1016 = vrot.slane %v970, 1
    %v1017 = vrot.slane %v973, 1
    %v1018 = vrot.slane %v976, 1
    %v1019 = vrot.slane %v979, 1
    %v1020 = vrot.slane %v982, 1
    %v1021 = vrot.slane %v985, 1
    %v1022 = vrot.slane %v988, 1
    %v1039 = vmax.f32 %v943, %v1007
    %v1040 = vmax.f32 %v946, %v1008
    %v1041 = vmax.f32 %v949, %v1009
    %v1042 = vmax.f32 %v952, %v1010
    %v1043 = vmax.f32 %v955, %v1011
    %v1044 = vmax.f32 %v958, %v1012
    %v1045 = vmax.f32 %v961, %v1013
    %v1046 = vmax.f32 %v964, %v1014
    %v1047 = vmax.f32 %v967, %v1015
    %v1048 = vmax.f32 %v970, %v1016
    %v1049 = vmax.f32 %v973, %v1017
    %v1050 = vmax.f32 %v976, %v1018
    %v1051 = vmax.f32 %v979, %v1019
    %v1052 = vmax.f32 %v982, %v1020
    %v1053 = vmax.f32 %v985, %v1021
    %v1054 = vmax.f32 %v988, %v1022
    %v1055 = vrot.slane %v943, 2
    %v1056 = vrot.slane %v946, 2
    %v1057 = vrot.slane %v949, 2
    %v1058 = vrot.slane %v952, 2
    %v1059 = vrot.slane %v955, 2
    %v1060 = vrot.slane %v958, 2
    %v1061 = vrot.slane %v961, 2
    %v1062 = vrot.slane %v964, 2
    %v1063 = vrot.slane %v967, 2
    %v1064 = vrot.slane %v970, 2
    %v1065 = vrot.slane %v973, 2
    %v1066 = vrot.slane %v976, 2
    %v1067 = vrot.slane %v979, 2
    %v1068 = vrot.slane %v982, 2
    %v1069 = vrot.slane %v985, 2
    %v1070 = vrot.slane %v988, 2
    %v1087 = vmax.f32 %v1039, %v1055
    %v1088 = vmax.f32 %v1040, %v1056
    %v1089 = vmax.f32 %v1041, %v1057
    %v1090 = vmax.f32 %v1042, %v1058
    %v1091 = vmax.f32 %v1043, %v1059
    %v1092 = vmax.f32 %v1044, %v1060
    %v1093 = vmax.f32 %v1045, %v1061
    %v1094 = vmax.f32 %v1046, %v1062
    %v1095 = vmax.f32 %v1047, %v1063
    %v1096 = vmax.f32 %v1048, %v1064
    %v1097 = vmax.f32 %v1049, %v1065
    %v1098 = vmax.f32 %v1050, %v1066
    %v1099 = vmax.f32 %v1051, %v1067
    %v1100 = vmax.f32 %v1052, %v1068
    %v1101 = vmax.f32 %v1053, %v1069
    %v1102 = vmax.f32 %v1054, %v1070
    %v1119 = vrot.slane %v944, 2
    %v1120 = vrot.slane %v947, 2
    %v1121 = vrot.slane %v950, 2
    %v1122 = vrot.slane %v953, 2
    %v1123 = vrot.slane %v956, 2
    %v1124 = vrot.slane %v959, 2
    %v1125 = vrot.slane %v962, 2
    %v1126 = vrot.slane %v965, 2
    %v1127 = vrot.slane %v968, 2
    %v1128 = vrot.slane %v971, 2
    %v1129 = vrot.slane %v974, 2
    %v1130 = vrot.slane %v977, 2
    %v1131 = vrot.slane %v980, 2
    %v1132 = vrot.slane %v983, 2
    %v1133 = vrot.slane %v986, 2
    %v1134 = vrot.slane %v989, 2
    %v1151 = vmax.f32 %v1039, %v1119
    %v1152 = vmax.f32 %v1040, %v1120
    %v1153 = vmax.f32 %v1041, %v1121
    %v1154 = vmax.f32 %v1042, %v1122
    %v1155 = vmax.f32 %v1043, %v1123
    %v1156 = vmax.f32 %v1044, %v1124
    %v1157 = vmax.f32 %v1045, %v1125
    %v1158 = vmax.f32 %v1046, %v1126
    %v1159 = vmax.f32 %v1047, %v1127
    %v1160 = vmax.f32 %v1048, %v1128
    %v1161 = vmax.f32 %v1049, %v1129
    %v1162 = vmax.f32 %v1050, %v1130
    %v1163 = vmax.f32 %v1051, %v1131
    %v1164 = vmax.f32 %v1052, %v1132
    %v1165 = vmax.f32 %v1053, %v1133
    %v1166 = vmax.f32 %v1054, %v1134
    %v1167 = vrot.slane %v944, 1
    %v1168 = vrot.slane %v947, 1
    %v1169 = vrot.slane %v950, 1
    %v1170 = vrot.slane %v953, 1
    %v1171 = vrot.slane %v956, 1
    %v1172 = vrot.slane %v959, 1
    %v1173 = vrot.slane %v962, 1
    %v1174 = vrot.slane %v965, 1
    %v1175 = vrot.slane %v968, 1
    %v1176 = vrot.slane %v971, 1
    %v1177 = vrot.slane %v974, 1
    %v1178 = vrot.slane %v977, 1
    %v1179 = vrot.slane %v980, 1
    %v1180 = vrot.slane %v983, 1
    %v1181 = vrot.slane %v986, 1
    %v1182 = vrot.slane %v989, 1
    %v1199 = vmax.f32 %v944, %v1167
    %v1200 = vmax.f32 %v947, %v1168
    %v1201 = vmax.f32 %v950, %v1169
    %v1202 = vmax.f32 %v953, %v1170
    %v1203 = vmax.f32 %v956, %v1171
    %v1204 = vmax.f32 %v959, %v1172
    %v1205 = vmax.f32 %v962, %v1173
    %v1206 = vmax.f32 %v965, %v1174
    %v1207 = vmax.f32 %v968, %v1175
    %v1208 = vmax.f32 %v971, %v1176
    %v1209 = vmax.f32 %v974, %v1177
    %v1210 = vmax.f32 %v977, %v1178
    %v1211 = vmax.f32 %v980, %v1179
    %v1212 = vmax.f32 %v983, %v1180
    %v1213 = vmax.f32 %v986, %v1181
    %v1214 = vmax.f32 %v989, %v1182
    %v1215 = vmax.f32 %v1199, %v1119
    %v1216 = vmax.f32 %v1200, %v1120
    %v1217 = vmax.f32 %v1201, %v1121
    %v1218 = vmax.f32 %v1202, %v1122
    %v1219 = vmax.f32 %v1203, %v1123
    %v1220 = vmax.f32 %v1204, %v1124
    %v1221 = vmax.f32 %v1205, %v1125
    %v1222 = vmax.f32 %v1206, %v1126
    %v1223 = vmax.f32 %v1207, %v1127
    %v1224 = vmax.f32 %v1208, %v1128
    %v1225 = vmax.f32 %v1209, %v1129
    %v1226 = vmax.f32 %v1210, %v1130
    %v1227 = vmax.f32 %v1211, %v1131
    %v1228 = vmax.f32 %v1212, %v1132
    %v1229 = vmax.f32 %v1213, %v1133
    %v1230 = vmax.f32 %v1214, %v1134
    %v1247 = vrot.slane %v945, 2
    %v1248 = vrot.slane %v948, 2
    %v1249 = vrot.slane %v951, 2
    %v1250 = vrot.slane %v954, 2
    %v1251 = vrot.slane %v957, 2
    %v1252 = vrot.slane %v960, 2
    %v1253 = vrot.slane %v963, 2
    %v1254 = vrot.slane %v966, 2
    %v1255 = vrot.slane %v969, 2
    %v1256 = vrot.slane %v972, 2
    %v1257 = vrot.slane %v975, 2
    %v1258 = vrot.slane %v978, 2
    %v1259 = vrot.slane %v981, 2
    %v1260 = vrot.slane %v984, 2
    %v1261 = vrot.slane %v987, 2
    %v1262 = vrot.slane %v990, 2
    %v1279 = vmax.f32 %v1199, %v1247
    %v1280 = vmax.f32 %v1200, %v1248
    %v1281 = vmax.f32 %v1201, %v1249
    %v1282 = vmax.f32 %v1202, %v1250
    %v1283 = vmax.f32 %v1203, %v1251
    %v1284 = vmax.f32 %v1204, %v1252
    %v1285 = vmax.f32 %v1205, %v1253
    %v1286 = vmax.f32 %v1206, %v1254
    %v1287 = vmax.f32 %v1207, %v1255
    %v1288 = vmax.f32 %v1208, %v1256
    %v1289 = vmax.f32 %v1209, %v1257
    %v1290 = vmax.f32 %v1210, %v1258
    %v1291 = vmax.f32 %v1211, %v1259
    %v1292 = vmax.f32 %v1212, %v1260
    %v1293 = vmax.f32 %v1213, %v1261
    %v1294 = vmax.f32 %v1214, %v1262
    %v1311 = vrot.slane %v1087, 2
    %v1312 = vrot.slane %v1088, 2
    %v1313 = vrot.slane %v1089, 2
    %v1314 = vrot.slane %v1090, 2
    %v1315 = vrot.slane %v1091, 2
    %v1316 = vrot.slane %v1092, 2
    %v1317 = vrot.slane %v1093, 2
    %v1318 = vrot.slane %v1094, 2
    %v1319 = vrot.slane %v1095, 2
    %v1320 = vrot.slane %v1096, 2
    %v1321 = vrot.slane %v1097, 2
    %v1322 = vrot.slane %v1098, 2
    %v1323 = vrot.slane %v1099, 2
    %v1324 = vrot.slane %v1100, 2
    %v1325 = vrot.slane %v1101, 2
    %v1326 = vrot.slane %v1102, 2
    %1327 = vrot.lane.b32.xlu0 %v1311, 48
    %v1328 = vpop.permute.xlu0 %1327
    %1329 = vrot.lane.b32.xlu0 %v1312, 48
    %v1330 = vpop.permute.xlu0 %1329
    %1331 = vrot.lane.b32.xlu0 %v1313, 48
    %v1332 = vpop.permute.xlu0 %1331
    %1333 = vrot.lane.b32.xlu0 %v1314, 48
    %v1334 = vpop.permute.xlu0 %1333
    %1335 = vrot.lane.b32.xlu0 %v1315, 48
    %v1336 = vpop.permute.xlu0 %1335
    %1337 = vrot.lane.b32.xlu0 %v1316, 48
    %v1338 = vpop.permute.xlu0 %1337
    %1339 = vrot.lane.b32.xlu0 %v1317, 48
    %v1340 = vpop.permute.xlu0 %1339
    %1341 = vrot.lane.b32.xlu0 %v1318, 48
    %v1342 = vpop.permute.xlu0 %1341
    %1343 = vrot.lane.b32.xlu0 %v1319, 48
    %v1344 = vpop.permute.xlu0 %1343
    %1345 = vrot.lane.b32.xlu0 %v1320, 48
    %v1346 = vpop.permute.xlu0 %1345
    %1347 = vrot.lane.b32.xlu0 %v1321, 48
    %v1348 = vpop.permute.xlu0 %1347
    %1349 = vrot.lane.b32.xlu0 %v1322, 48
    %v1350 = vpop.permute.xlu0 %1349
    %1351 = vrot.lane.b32.xlu0 %v1323, 48
    %v1352 = vpop.permute.xlu0 %1351
    %1353 = vrot.lane.b32.xlu0 %v1324, 48
    %v1354 = vpop.permute.xlu0 %1353
    %1355 = vrot.lane.b32.xlu0 %v1325, 48
    %v1356 = vpop.permute.xlu0 %1355
    %1357 = vrot.lane.b32.xlu0 %v1326, 48
    %v1358 = vpop.permute.xlu0 %1357
    %v1375 = vrot.slane %v1087, 4
    %v1376 = vrot.slane %v1088, 4
    %v1377 = vrot.slane %v1089, 4
    %v1378 = vrot.slane %v1090, 4
    %v1379 = vrot.slane %v1091, 4
    %v1380 = vrot.slane %v1092, 4
    %v1381 = vrot.slane %v1093, 4
    %v1382 = vrot.slane %v1094, 4
    %v1383 = vrot.slane %v1095, 4
    %v1384 = vrot.slane %v1096, 4
    %v1385 = vrot.slane %v1097, 4
    %v1386 = vrot.slane %v1098, 4
    %v1387 = vrot.slane %v1099, 4
    %v1388 = vrot.slane %v1100, 4
    %v1389 = vrot.slane %v1101, 4
    %v1390 = vrot.slane %v1102, 4
    %1391 = vrot.lane.b32.xlu0 %v1375, 96
    %v1392 = vpop.permute.xlu0 %1391
    %1393 = vrot.lane.b32.xlu0 %v1376, 96
    %v1394 = vpop.permute.xlu0 %1393
    %1395 = vrot.lane.b32.xlu0 %v1377, 96
    %v1396 = vpop.permute.xlu0 %1395
    %1397 = vrot.lane.b32.xlu0 %v1378, 96
    %v1398 = vpop.permute.xlu0 %1397
    %1399 = vrot.lane.b32.xlu0 %v1379, 96
    %v1400 = vpop.permute.xlu0 %1399
    %1401 = vrot.lane.b32.xlu0 %v1380, 96
    %v1402 = vpop.permute.xlu0 %1401
    %1403 = vrot.lane.b32.xlu0 %v1381, 96
    %v1404 = vpop.permute.xlu0 %1403
    %1405 = vrot.lane.b32.xlu0 %v1382, 96
    %v1406 = vpop.permute.xlu0 %1405
    %1407 = vrot.lane.b32.xlu0 %v1383, 96
    %v1408 = vpop.permute.xlu0 %1407
    %1409 = vrot.lane.b32.xlu0 %v1384, 96
    %v1410 = vpop.permute.xlu0 %1409
    %1411 = vrot.lane.b32.xlu0 %v1385, 96
    %v1412 = vpop.permute.xlu0 %1411
    %1413 = vrot.lane.b32.xlu0 %v1386, 96
    %v1414 = vpop.permute.xlu0 %1413
    %1415 = vrot.lane.b32.xlu0 %v1387, 96
    %v1416 = vpop.permute.xlu0 %1415
    %1417 = vrot.lane.b32.xlu0 %v1388, 96
    %v1418 = vpop.permute.xlu0 %1417
    %1419 = vrot.lane.b32.xlu0 %v1389, 96
    %v1420 = vpop.permute.xlu0 %1419
    %1421 = vrot.lane.b32.xlu0 %v1390, 96
    %v1422 = vpop.permute.xlu0 %1421
    %v1455 = vrot.slane %v1151, 6
    %v1456 = vrot.slane %v1152, 6
    %v1457 = vrot.slane %v1153, 6
    %v1458 = vrot.slane %v1154, 6
    %v1459 = vrot.slane %v1155, 6
    %v1460 = vrot.slane %v1156, 6
    %v1461 = vrot.slane %v1157, 6
    %v1462 = vrot.slane %v1158, 6
    %v1463 = vrot.slane %v1159, 6
    %v1464 = vrot.slane %v1160, 6
    %v1465 = vrot.slane %v1161, 6
    %v1466 = vrot.slane %v1162, 6
    %v1467 = vrot.slane %v1163, 6
    %v1468 = vrot.slane %v1164, 6
    %v1469 = vrot.slane %v1165, 6
    %v1470 = vrot.slane %v1166, 6
    %1471 = vrot.lane.b32.xlu0 %v1455, 16
    %v1472 = vpop.permute.xlu0 %1471
    %1473 = vrot.lane.b32.xlu0 %v1456, 16
    %v1474 = vpop.permute.xlu0 %1473
    %1475 = vrot.lane.b32.xlu0 %v1457, 16
    %v1476 = vpop.permute.xlu0 %1475
    %1477 = vrot.lane.b32.xlu0 %v1458, 16
    %v1478 = vpop.permute.xlu0 %1477
    %1479 = vrot.lane.b32.xlu0 %v1459, 16
    %v1480 = vpop.permute.xlu0 %1479
    %1481 = vrot.lane.b32.xlu0 %v1460, 16
    %v1482 = vpop.permute.xlu0 %1481
    %1483 = vrot.lane.b32.xlu0 %v1461, 16
    %v1484 = vpop.permute.xlu0 %1483
    %1485 = vrot.lane.b32.xlu0 %v1462, 16
    %v1486 = vpop.permute.xlu0 %1485
    %1487 = vrot.lane.b32.xlu0 %v1463, 16
    %v1488 = vpop.permute.xlu0 %1487
    %1489 = vrot.lane.b32.xlu0 %v1464, 16
    %v1490 = vpop.permute.xlu0 %1489
    %1491 = vrot.lane.b32.xlu0 %v1465, 16
    %v1492 = vpop.permute.xlu0 %1491
    %1493 = vrot.lane.b32.xlu0 %v1466, 16
    %v1494 = vpop.permute.xlu0 %1493
    %1495 = vrot.lane.b32.xlu0 %v1467, 16
    %v1496 = vpop.permute.xlu0 %1495
    %1497 = vrot.lane.b32.xlu0 %v1468, 16
    %v1498 = vpop.permute.xlu0 %1497
    %1499 = vrot.lane.b32.xlu0 %v1469, 16
    %v1500 = vpop.permute.xlu0 %1499
    %1501 = vrot.lane.b32.xlu0 %v1470, 16
    %v1502 = vpop.permute.xlu0 %1501
    %1535 = vrot.lane.b32.xlu0 %v1215, 64
    %v1536 = vpop.permute.xlu0 %1535
    %1537 = vrot.lane.b32.xlu0 %v1216, 64
    %v1538 = vpop.permute.xlu0 %1537
    %1539 = vrot.lane.b32.xlu0 %v1217, 64
    %v1540 = vpop.permute.xlu0 %1539
    %1541 = vrot.lane.b32.xlu0 %v1218, 64
    %v1542 = vpop.permute.xlu0 %1541
    %1543 = vrot.lane.b32.xlu0 %v1219, 64
    %v1544 = vpop.permute.xlu0 %1543
    %1545 = vrot.lane.b32.xlu0 %v1220, 64
    %v1546 = vpop.permute.xlu0 %1545
    %1547 = vrot.lane.b32.xlu0 %v1221, 64
    %v1548 = vpop.permute.xlu0 %1547
    %1549 = vrot.lane.b32.xlu0 %v1222, 64
    %v1550 = vpop.permute.xlu0 %1549
    %1551 = vrot.lane.b32.xlu0 %v1223, 64
    %v1552 = vpop.permute.xlu0 %1551
    %1553 = vrot.lane.b32.xlu0 %v1224, 64
    %v1554 = vpop.permute.xlu0 %1553
    %1555 = vrot.lane.b32.xlu0 %v1225, 64
    %v1556 = vpop.permute.xlu0 %1555
    %1557 = vrot.lane.b32.xlu0 %v1226, 64
    %v1558 = vpop.permute.xlu0 %1557
    %1559 = vrot.lane.b32.xlu0 %v1227, 64
    %v1560 = vpop.permute.xlu0 %1559
    %1561 = vrot.lane.b32.xlu0 %v1228, 64
    %v1562 = vpop.permute.xlu0 %1561
    %1563 = vrot.lane.b32.xlu0 %v1229, 64
    %v1564 = vpop.permute.xlu0 %1563
    %1565 = vrot.lane.b32.xlu0 %v1230, 64
    %v1566 = vpop.permute.xlu0 %1565
    %v1583 = vrot.slane %v1215, 2
    %v1584 = vrot.slane %v1216, 2
    %v1585 = vrot.slane %v1217, 2
    %v1586 = vrot.slane %v1218, 2
    %v1587 = vrot.slane %v1219, 2
    %v1588 = vrot.slane %v1220, 2
    %v1589 = vrot.slane %v1221, 2
    %v1590 = vrot.slane %v1222, 2
    %v1591 = vrot.slane %v1223, 2
    %v1592 = vrot.slane %v1224, 2
    %v1593 = vrot.slane %v1225, 2
    %v1594 = vrot.slane %v1226, 2
    %v1595 = vrot.slane %v1227, 2
    %v1596 = vrot.slane %v1228, 2
    %v1597 = vrot.slane %v1229, 2
    %v1598 = vrot.slane %v1230, 2
    %1599 = vrot.lane.b32.xlu0 %v1583, 112
    %v1600 = vpop.permute.xlu0 %1599
    %1601 = vrot.lane.b32.xlu0 %v1584, 112
    %v1602 = vpop.permute.xlu0 %1601
    %1603 = vrot.lane.b32.xlu0 %v1585, 112
    %v1604 = vpop.permute.xlu0 %1603
    %1605 = vrot.lane.b32.xlu0 %v1586, 112
    %v1606 = vpop.permute.xlu0 %1605
    %1607 = vrot.lane.b32.xlu0 %v1587, 112
    %v1608 = vpop.permute.xlu0 %1607
    %1609 = vrot.lane.b32.xlu0 %v1588, 112
    %v1610 = vpop.permute.xlu0 %1609
    %1611 = vrot.lane.b32.xlu0 %v1589, 112
    %v1612 = vpop.permute.xlu0 %1611
    %1613 = vrot.lane.b32.xlu0 %v1590, 112
    %v1614 = vpop.permute.xlu0 %1613
    %1615 = vrot.lane.b32.xlu0 %v1591, 112
    %v1616 = vpop.permute.xlu0 %1615
    %1617 = vrot.lane.b32.xlu0 %v1592, 112
    %v1618 = vpop.permute.xlu0 %1617
    %1619 = vrot.lane.b32.xlu0 %v1593, 112
    %v1620 = vpop.permute.xlu0 %1619
    %1621 = vrot.lane.b32.xlu0 %v1594, 112
    %v1622 = vpop.permute.xlu0 %1621
    %1623 = vrot.lane.b32.xlu0 %v1595, 112
    %v1624 = vpop.permute.xlu0 %1623
    %1625 = vrot.lane.b32.xlu0 %v1596, 112
    %v1626 = vpop.permute.xlu0 %1625
    %1627 = vrot.lane.b32.xlu0 %v1597, 112
    %v1628 = vpop.permute.xlu0 %1627
    %1629 = vrot.lane.b32.xlu0 %v1598, 112
    %v1630 = vpop.permute.xlu0 %1629
    %v1647 = vrot.slane %v1215, 4
    %v1648 = vrot.slane %v1216, 4
    %v1649 = vrot.slane %v1217, 4
    %v1650 = vrot.slane %v1218, 4
    %v1651 = vrot.slane %v1219, 4
    %v1652 = vrot.slane %v1220, 4
    %v1653 = vrot.slane %v1221, 4
    %v1654 = vrot.slane %v1222, 4
    %v1655 = vrot.slane %v1223, 4
    %v1656 = vrot.slane %v1224, 4
    %v1657 = vrot.slane %v1225, 4
    %v1658 = vrot.slane %v1226, 4
    %v1659 = vrot.slane %v1227, 4
    %v1660 = vrot.slane %v1228, 4
    %v1661 = vrot.slane %v1229, 4
    %v1662 = vrot.slane %v1230, 4
    %1663 = vrot.lane.b32.xlu0 %v1647, 32
    %v1664 = vpop.permute.xlu0 %1663
    %1665 = vrot.lane.b32.xlu0 %v1648, 32
    %v1666 = vpop.permute.xlu0 %1665
    %1667 = vrot.lane.b32.xlu0 %v1649, 32
    %v1668 = vpop.permute.xlu0 %1667
    %1669 = vrot.lane.b32.xlu0 %v1650, 32
    %v1670 = vpop.permute.xlu0 %1669
    %1671 = vrot.lane.b32.xlu0 %v1651, 32
    %v1672 = vpop.permute.xlu0 %1671
    %1673 = vrot.lane.b32.xlu0 %v1652, 32
    %v1674 = vpop.permute.xlu0 %1673
    %1675 = vrot.lane.b32.xlu0 %v1653, 32
    %v1676 = vpop.permute.xlu0 %1675
    %1677 = vrot.lane.b32.xlu0 %v1654, 32
    %v1678 = vpop.permute.xlu0 %1677
    %1679 = vrot.lane.b32.xlu0 %v1655, 32
    %v1680 = vpop.permute.xlu0 %1679
    %1681 = vrot.lane.b32.xlu0 %v1656, 32
    %v1682 = vpop.permute.xlu0 %1681
    %1683 = vrot.lane.b32.xlu0 %v1657, 32
    %v1684 = vpop.permute.xlu0 %1683
    %1685 = vrot.lane.b32.xlu0 %v1658, 32
    %v1686 = vpop.permute.xlu0 %1685
    %1687 = vrot.lane.b32.xlu0 %v1659, 32
    %v1688 = vpop.permute.xlu0 %1687
    %1689 = vrot.lane.b32.xlu0 %v1660, 32
    %v1690 = vpop.permute.xlu0 %1689
    %1691 = vrot.lane.b32.xlu0 %v1661, 32
    %v1692 = vpop.permute.xlu0 %1691
    %1693 = vrot.lane.b32.xlu0 %v1662, 32
    %v1694 = vpop.permute.xlu0 %1693
    %v1727 = vrot.slane %v1279, 6
    %v1728 = vrot.slane %v1280, 6
    %v1729 = vrot.slane %v1281, 6
    %v1730 = vrot.slane %v1282, 6
    %v1731 = vrot.slane %v1283, 6
    %v1732 = vrot.slane %v1284, 6
    %v1733 = vrot.slane %v1285, 6
    %v1734 = vrot.slane %v1286, 6
    %v1735 = vrot.slane %v1287, 6
    %v1736 = vrot.slane %v1288, 6
    %v1737 = vrot.slane %v1289, 6
    %v1738 = vrot.slane %v1290, 6
    %v1739 = vrot.slane %v1291, 6
    %v1740 = vrot.slane %v1292, 6
    %v1741 = vrot.slane %v1293, 6
    %v1742 = vrot.slane %v1294, 6
    %1743 = vrot.lane.b32.xlu0 %v1727, 80
    %v1744 = vpop.permute.xlu0 %1743
    %1745 = vrot.lane.b32.xlu0 %v1728, 80
    %v1746 = vpop.permute.xlu0 %1745
    %1747 = vrot.lane.b32.xlu0 %v1729, 80
    %v1748 = vpop.permute.xlu0 %1747
    %1749 = vrot.lane.b32.xlu0 %v1730, 80
    %v1750 = vpop.permute.xlu0 %1749
    %1751 = vrot.lane.b32.xlu0 %v1731, 80
    %v1752 = vpop.permute.xlu0 %1751
    %1753 = vrot.lane.b32.xlu0 %v1732, 80
    %v1754 = vpop.permute.xlu0 %1753
    %1755 = vrot.lane.b32.xlu0 %v1733, 80
    %v1756 = vpop.permute.xlu0 %1755
    %1757 = vrot.lane.b32.xlu0 %v1734, 80
    %v1758 = vpop.permute.xlu0 %1757
    %1759 = vrot.lane.b32.xlu0 %v1735, 80
    %v1760 = vpop.permute.xlu0 %1759
    %1761 = vrot.lane.b32.xlu0 %v1736, 80
    %v1762 = vpop.permute.xlu0 %1761
    %1763 = vrot.lane.b32.xlu0 %v1737, 80
    %v1764 = vpop.permute.xlu0 %1763
    %1765 = vrot.lane.b32.xlu0 %v1738, 80
    %v1766 = vpop.permute.xlu0 %1765
    %1767 = vrot.lane.b32.xlu0 %v1739, 80
    %v1768 = vpop.permute.xlu0 %1767
    %1769 = vrot.lane.b32.xlu0 %v1740, 80
    %v1770 = vpop.permute.xlu0 %1769
    %1771 = vrot.lane.b32.xlu0 %v1741, 80
    %v1772 = vpop.permute.xlu0 %1771
    %1773 = vrot.lane.b32.xlu0 %v1742, 80
    %v1774 = vpop.permute.xlu0 %1773
    %v1791 = vsel %vm644, %v1087, %v1328
    %v1792 = vsel %vm644, %v1088, %v1330
    %v1793 = vsel %vm644, %v1089, %v1332
    %v1794 = vsel %vm644, %v1090, %v1334
    %v1795 = vsel %vm644, %v1091, %v1336
    %v1796 = vsel %vm644, %v1092, %v1338
    %v1797 = vsel %vm644, %v1093, %v1340
    %v1798 = vsel %vm644, %v1094, %v1342
    %v1799 = vsel %vm644, %v1095, %v1344
    %v1800 = vsel %vm644, %v1096, %v1346
    %v1801 = vsel %vm644, %v1097, %v1348
    %v1802 = vsel %vm644, %v1098, %v1350
    %v1803 = vsel %vm644, %v1099, %v1352
    %v1804 = vsel %vm644, %v1100, %v1354
    %v1805 = vsel %vm644, %v1101, %v1356
    %v1806 = vsel %vm644, %v1102, %v1358
    %vm1807 = vcmask 785408
    %v1808 = vsel %vm1807, %v1791, %v1392
    %v1809 = vsel %vm1807, %v1792, %v1394
    %v1810 = vsel %vm1807, %v1793, %v1396
    %v1811 = vsel %vm1807, %v1794, %v1398
    %v1812 = vsel %vm1807, %v1795, %v1400
    %v1813 = vsel %vm1807, %v1796, %v1402
    %v1814 = vsel %vm1807, %v1797, %v1404
    %v1815 = vsel %vm1807, %v1798, %v1406
    %v1816 = vsel %vm1807, %v1799, %v1408
    %v1817 = vsel %vm1807, %v1800, %v1410
    %v1818 = vsel %vm1807, %v1801, %v1412
    %v1819 = vsel %vm1807, %v1802, %v1414
    %v1820 = vsel %vm1807, %v1803, %v1416
    %v1821 = vsel %vm1807, %v1804, %v1418
    %v1822 = vsel %vm1807, %v1805, %v1420
    %v1823 = vsel %vm1807, %v1806, %v1422
    %vm1824 = vcmask 130048
    %v1825 = vsel %vm1824, %v1392, %v1472
    %v1826 = vsel %vm1824, %v1394, %v1474
    %v1827 = vsel %vm1824, %v1396, %v1476
    %v1828 = vsel %vm1824, %v1398, %v1478
    %v1829 = vsel %vm1824, %v1400, %v1480
    %v1830 = vsel %vm1824, %v1402, %v1482
    %v1831 = vsel %vm1824, %v1404, %v1484
    %v1832 = vsel %vm1824, %v1406, %v1486
    %v1833 = vsel %vm1824, %v1408, %v1488
    %v1834 = vsel %vm1824, %v1410, %v1490
    %v1835 = vsel %vm1824, %v1412, %v1492
    %v1836 = vsel %vm1824, %v1414, %v1494
    %v1837 = vsel %vm1824, %v1416, %v1496
    %v1838 = vsel %vm1824, %v1418, %v1498
    %v1839 = vsel %vm1824, %v1420, %v1500
    %v1840 = vsel %vm1824, %v1422, %v1502
    %vm1841 = vcmask 523264
    %v1842 = vsel %vm1841, %v1825, %v1536
    %v1843 = vsel %vm1841, %v1826, %v1538
    %v1844 = vsel %vm1841, %v1827, %v1540
    %v1845 = vsel %vm1841, %v1828, %v1542
    %v1846 = vsel %vm1841, %v1829, %v1544
    %v1847 = vsel %vm1841, %v1830, %v1546
    %v1848 = vsel %vm1841, %v1831, %v1548
    %v1849 = vsel %vm1841, %v1832, %v1550
    %v1850 = vsel %vm1841, %v1833, %v1552
    %v1851 = vsel %vm1841, %v1834, %v1554
    %v1852 = vsel %vm1841, %v1835, %v1556
    %v1853 = vsel %vm1841, %v1836, %v1558
    %v1854 = vsel %vm1841, %v1837, %v1560
    %v1855 = vsel %vm1841, %v1838, %v1562
    %v1856 = vsel %vm1841, %v1839, %v1564
    %v1857 = vsel %vm1841, %v1840, %v1566
    %vm1858 = vcmask 916480
    %v1859 = vsel %vm1858, %v1842, %v1600
    %v1860 = vsel %vm1858, %v1843, %v1602
    %v1861 = vsel %vm1858, %v1844, %v1604
    %v1862 = vsel %vm1858, %v1845, %v1606
    %v1863 = vsel %vm1858, %v1846, %v1608
    %v1864 = vsel %vm1858, %v1847, %v1610
    %v1865 = vsel %vm1858, %v1848, %v1612
    %v1866 = vsel %vm1858, %v1849, %v1614
    %v1867 = vsel %vm1858, %v1850, %v1616
    %v1868 = vsel %vm1858, %v1851, %v1618
    %v1869 = vsel %vm1858, %v1852, %v1620
    %v1870 = vsel %vm1858, %v1853, %v1622
    %v1871 = vsel %vm1858, %v1854, %v1624
    %v1872 = vsel %vm1858, %v1855, %v1626
    %v1873 = vsel %vm1858, %v1856, %v1628
    %v1874 = vsel %vm1858, %v1857, %v1630
    %vm1875 = vcmask 261120
    %v1876 = vsel %vm1875, %v1600, %v1664
    %v1877 = vsel %vm1875, %v1602, %v1666
    %v1878 = vsel %vm1875, %v1604, %v1668
    %v1879 = vsel %vm1875, %v1606, %v1670
    %v1880 = vsel %vm1875, %v1608, %v1672
    %v1881 = vsel %vm1875, %v1610, %v1674
    %v1882 = vsel %vm1875, %v1612, %v1676
    %v1883 = vsel %vm1875, %v1614, %v1678
    %v1884 = vsel %vm1875, %v1616, %v1680
    %v1885 = vsel %vm1875, %v1618, %v1682
    %v1886 = vsel %vm1875, %v1620, %v1684
    %v1887 = vsel %vm1875, %v1622, %v1686
    %v1888 = vsel %vm1875, %v1624, %v1688
    %v1889 = vsel %vm1875, %v1626, %v1690
    %v1890 = vsel %vm1875, %v1628, %v1692
    %v1891 = vsel %vm1875, %v1630, %v1694
    %vm1892 = vcmask 654336
    %v1893 = vsel %vm1892, %v1876, %v1744
    %v1894 = vsel %vm1892, %v1877, %v1746
    %v1895 = vsel %vm1892, %v1878, %v1748
    %v1896 = vsel %vm1892, %v1879, %v1750
    %v1897 = vsel %vm1892, %v1880, %v1752
    %v1898 = vsel %vm1892, %v1881, %v1754
    %v1899 = vsel %vm1892, %v1882, %v1756
    %v1900 = vsel %vm1892, %v1883, %v1758
    %v1901 = vsel %vm1892, %v1884, %v1760
    %v1902 = vsel %vm1892, %v1885, %v1762
    %v1903 = vsel %vm1892, %v1886, %v1764
    %v1904 = vsel %vm1892, %v1887, %v1766
    %v1905 = vsel %vm1892, %v1888, %v1768
    %v1906 = vsel %vm1892, %v1889, %v1770
    %v1907 = vsel %vm1892, %v1890, %v1772
    %v1908 = vsel %vm1892, %v1891, %v1774
    %v1909 = vmax.f32 %v1808, 0.002
    %v1910 = vmax.f32 %v1859, 0.002
    %v1911 = vmax.f32 %v1893, 0.002
    %v1912 = vmax.f32 %v1809, 0.002
    %v1913 = vmax.f32 %v1860, 0.002
    %v1914 = vmax.f32 %v1894, 0.002
    %v1915 = vmax.f32 %v1810, 0.002
    %v1916 = vmax.f32 %v1861, 0.002
    %v1917 = vmax.f32 %v1895, 0.002
    %v1918 = vmax.f32 %v1811, 0.002
    %v1919 = vmax.f32 %v1862, 0.002
    %v1920 = vmax.f32 %v1896, 0.002
    %v1921 = vmax.f32 %v1812, 0.002
    %v1922 = vmax.f32 %v1863, 0.002
    %v1923 = vmax.f32 %v1897, 0.002
    %v1924 = vmax.f32 %v1813, 0.002
    %v1925 = vmax.f32 %v1864, 0.002
    %v1926 = vmax.f32 %v1898, 0.002
    %v1927 = vmax.f32 %v1814, 0.002
    %v1928 = vmax.f32 %v1865, 0.002
    %v1929 = vmax.f32 %v1899, 0.002
    %v1930 = vmax.f32 %v1815, 0.002
    %v1931 = vmax.f32 %v1866, 0.002
    %v1932 = vmax.f32 %v1900, 0.002
    %v1933 = vmax.f32 %v1816, 0.002
    %v1934 = vmax.f32 %v1867, 0.002
    %v1935 = vmax.f32 %v1901, 0.002
    %v1936 = vmax.f32 %v1817, 0.002
    %v1937 = vmax.f32 %v1868, 0.002
    %v1938 = vmax.f32 %v1902, 0.002
    %v1939 = vmax.f32 %v1818, 0.002
    %v1940 = vmax.f32 %v1869, 0.002
    %v1941 = vmax.f32 %v1903, 0.002
    %v1942 = vmax.f32 %v1819, 0.002
    %v1943 = vmax.f32 %v1870, 0.002
    %v1944 = vmax.f32 %v1904, 0.002
    %v1945 = vmax.f32 %v1820, 0.002
    %v1946 = vmax.f32 %v1871, 0.002
    %v1947 = vmax.f32 %v1905, 0.002
    %v1948 = vmax.f32 %v1821, 0.002
    %v1949 = vmax.f32 %v1872, 0.002
    %v1950 = vmax.f32 %v1906, 0.002
    %v1951 = vmax.f32 %v1822, 0.002
    %v1952 = vmax.f32 %v1873, 0.002
    %v1953 = vmax.f32 %v1907, 0.002
    %v1954 = vmax.f32 %v1823, 0.002
    %v1955 = vmax.f32 %v1874, 0.002
    %v1956 = vmax.f32 %v1908, 0.002
    %v1957 = vmin.f32 %v1909, 0.003
    %v1958 = vmin.f32 %v1910, 0.003
    %v1959 = vmin.f32 %v1911, 0.003
    %v1960 = vmin.f32 %v1912, 0.003
    %v1961 = vmin.f32 %v1913, 0.003
    %v1962 = vmin.f32 %v1914, 0.003
    %v1963 = vmin.f32 %v1915, 0.003
    %v1964 = vmin.f32 %v1916, 0.003
    %v1965 = vmin.f32 %v1917, 0.003
    %v1966 = vmin.f32 %v1918, 0.003
    %v1967 = vmin.f32 %v1919, 0.003
    %v1968 = vmin.f32 %v1920, 0.003
    %v1969 = vmin.f32 %v1921, 0.003
    %v1970 = vmin.f32 %v1922, 0.003
    %v1971 = vmin.f32 %v1923, 0.003
    %v1972 = vmin.f32 %v1924, 0.003
    %v1973 = vmin.f32 %v1925, 0.003
    %v1974 = vmin.f32 %v1926, 0.003
    %v1975 = vmin.f32 %v1927, 0.003
    %v1976 = vmin.f32 %v1928, 0.003
    %v1977 = vmin.f32 %v1929, 0.003
    %v1978 = vmin.f32 %v1930, 0.003
    %v1979 = vmin.f32 %v1931, 0.003
    %v1980 = vmin.f32 %v1932, 0.003
    %v1981 = vmin.f32 %v1933, 0.003
    %v1982 = vmin.f32 %v1934, 0.003
    %v1983 = vmin.f32 %v1935, 0.003
    %v1984 = vmin.f32 %v1936, 0.003
    %v1985 = vmin.f32 %v1937, 0.003
    %v1986 = vmin.f32 %v1938, 0.003
    %v1987 = vmin.f32 %v1939, 0.003
    %v1988 = vmin.f32 %v1940, 0.003
    %v1989 = vmin.f32 %v1941, 0.003
    %v1990 = vmin.f32 %v1942, 0.003
    %v1991 = vmin.f32 %v1943, 0.003
    %v1992 = vmin.f32 %v1944, 0.003
    %v1993 = vmin.f32 %v1945, 0.003
    %v1994 = vmin.f32 %v1946, 0.003
    %v1995 = vmin.f32 %v1947, 0.003
    %v1996 = vmin.f32 %v1948, 0.003
    %v1997 = vmin.f32 %v1949, 0.003
    %v1998 = vmin.f32 %v1950, 0.003
    %v1999 = vmin.f32 %v1951, 0.003
    %v2000 = vmin.f32 %v1952, 0.003
    %v2001 = vmin.f32 %v1953, 0.003
    %v2002 = vmin.f32 %v1954, 0.003
    %v2003 = vmin.f32 %v1955, 0.003
    %v2004 = vmin.f32 %v1956, 0.003
    %v2053 = vcombine.low %v1957, %v1958
    %v2055 = vunpack.c.l.s4 1966171168
    %v2056 = vunpack.c.0.s8 %v2055
    %v2057 = vlaneseq
    %v2058 = vshrl.u32 %v2057, 7
    %v2059 = vsub.s32 %v2056, %v2058
    %v2060 = vrot.slane %v2053, %v2059
    %v2062 = vunpack.c.l.s4 1966171168
    %v2063 = vunpack.c.0.s8 %v2062
    %v2064 = vlaneseq
    %v2065 = vshrl.u32 %v2064, 7
    %v2066 = vsub.s32 %v2063, %v2065
    %v2067 = vrot.slane %v1959, %v2066
    %v2068 = vcombine.low %v2060, %v2067
    %v2070 = vunpack.c.l.s4 1966171168
    %v2071 = vunpack.c.0.s8 %v2070
    %v2072 = vlaneseq
    %v2073 = vshrl.u32 %v2072, 7
    %v2074 = vsub.s32 %v2071, %v2073
    %v2075 = vrot.slane %v2068, %v2074
    %v2076 = vcombine.low %v1960, %v1961
    %v2078 = vunpack.c.l.s4 1966171168
    %v2079 = vunpack.c.0.s8 %v2078
    %v2080 = vlaneseq
    %v2081 = vshrl.u32 %v2080, 7
    %v2082 = vsub.s32 %v2079, %v2081
    %v2083 = vrot.slane %v2076, %v2082
    %v2085 = vunpack.c.l.s4 1966171168
    %v2086 = vunpack.c.0.s8 %v2085
    %v2087 = vlaneseq
    %v2088 = vshrl.u32 %v2087, 7
    %v2089 = vsub.s32 %v2086, %v2088
    %v2090 = vrot.slane %v1962, %v2089
    %v2091 = vcombine.low %v2083, %v2090
    %v2093 = vunpack.c.l.s4 1966171168
    %v2094 = vunpack.c.0.s8 %v2093
    %v2095 = vlaneseq
    %v2096 = vshrl.u32 %v2095, 7
    %v2097 = vsub.s32 %v2094, %v2096
    %v2098 = vrot.slane %v2091, %v2097
    %v2099 = vcombine.low %v1963, %v1964
    %v2101 = vunpack.c.l.s4 1966171168
    %v2102 = vunpack.c.0.s8 %v2101
    %v2103 = vlaneseq
    %v2104 = vshrl.u32 %v2103, 7
    %v2105 = vsub.s32 %v2102, %v2104
    %v2106 = vrot.slane %v2099, %v2105
    %v2108 = vunpack.c.l.s4 1966171168
    %v2109 = vunpack.c.0.s8 %v2108
    %v2110 = vlaneseq
    %v2111 = vshrl.u32 %v2110, 7
    %v2112 = vsub.s32 %v2109, %v2111
    %v2113 = vrot.slane %v1965, %v2112
    %v2114 = vcombine.low %v2106, %v2113
    %v2116 = vunpack.c.l.s4 1966171168
    %v2117 = vunpack.c.0.s8 %v2116
    %v2118 = vlaneseq
    %v2119 = vshrl.u32 %v2118, 7
    %v2120 = vsub.s32 %v2117, %v2119
    %v2121 = vrot.slane %v2114, %v2120
    %v2122 = vcombine.low %v1966, %v1967
    %v2124 = vunpack.c.l.s4 1966171168
    %v2125 = vunpack.c.0.s8 %v2124
    %v2126 = vlaneseq
    %v2127 = vshrl.u32 %v2126, 7
    %v2128 = vsub.s32 %v2125, %v2127
    %v2129 = vrot.slane %v2122, %v2128
    %v2131 = vunpack.c.l.s4 1966171168
    %v2132 = vunpack.c.0.s8 %v2131
    %v2133 = vlaneseq
    %v2134 = vshrl.u32 %v2133, 7
    %v2135 = vsub.s32 %v2132, %v2134
    %v2136 = vrot.slane %v1968, %v2135
    %v2137 = vcombine.low %v2129, %v2136
    %v2139 = vunpack.c.l.s4 1966171168
    %v2140 = vunpack.c.0.s8 %v2139
    %v2141 = vlaneseq
    %v2142 = vshrl.u32 %v2141, 7
    %v2143 = vsub.s32 %v2140, %v2142
    %v2144 = vrot.slane %v2137, %v2143
    %v2145 = vcombine.low %v1969, %v1970
    %v2147 = vunpack.c.l.s4 1966171168
    %v2148 = vunpack.c.0.s8 %v2147
    %v2149 = vlaneseq
    %v2150 = vshrl.u32 %v2149, 7
    %v2151 = vsub.s32 %v2148, %v2150
    %v2152 = vrot.slane %v2145, %v2151
    %v2154 = vunpack.c.l.s4 1966171168
    %v2155 = vunpack.c.0.s8 %v2154
    %v2156 = vlaneseq
    %v2157 = vshrl.u32 %v2156, 7
    %v2158 = vsub.s32 %v2155, %v2157
    %v2159 = vrot.slane %v1971, %v2158
    %v2160 = vcombine.low %v2152, %v2159
    %v2162 = vunpack.c.l.s4 1966171168
    %v2163 = vunpack.c.0.s8 %v2162
    %v2164 = vlaneseq
    %v2165 = vshrl.u32 %v2164, 7
    %v2166 = vsub.s32 %v2163, %v2165
    %v2167 = vrot.slane %v2160, %v2166
    %v2168 = vcombine.low %v1972, %v1973
    %v2170 = vunpack.c.l.s4 1966171168
    %v2171 = vunpack.c.0.s8 %v2170
    %v2172 = vlaneseq
    %v2173 = vshrl.u32 %v2172, 7
    %v2174 = vsub.s32 %v2171, %v2173
    %v2175 = vrot.slane %v2168, %v2174
    %v2177 = vunpack.c.l.s4 1966171168
    %v2178 = vunpack.c.0.s8 %v2177
    %v2179 = vlaneseq
    %v2180 = vshrl.u32 %v2179, 7
    %v2181 = vsub.s32 %v2178, %v2180
    %v2182 = vrot.slane %v1974, %v2181
    %v2183 = vcombine.low %v2175, %v2182
    %v2185 = vunpack.c.l.s4 1966171168
    %v2186 = vunpack.c.0.s8 %v2185
    %v2187 = vlaneseq
    %v2188 = vshrl.u32 %v2187, 7
    %v2189 = vsub.s32 %v2186, %v2188
    %v2190 = vrot.slane %v2183, %v2189
    %v2191 = vcombine.low %v1975, %v1976
    %v2193 = vunpack.c.l.s4 1966171168
    %v2194 = vunpack.c.0.s8 %v2193
    %v2195 = vlaneseq
    %v2196 = vshrl.u32 %v2195, 7
    %v2197 = vsub.s32 %v2194, %v2196
    %v2198 = vrot.slane %v2191, %v2197
    %v2200 = vunpack.c.l.s4 1966171168
    %v2201 = vunpack.c.0.s8 %v2200
    %v2202 = vlaneseq
    %v2203 = vshrl.u32 %v2202, 7
    %v2204 = vsub.s32 %v2201, %v2203
    %v2205 = vrot.slane %v1977, %v2204
    %v2206 = vcombine.low %v2198, %v2205
    %v2208 = vunpack.c.l.s4 1966171168
    %v2209 = vunpack.c.0.s8 %v2208
    %v2210 = vlaneseq
    %v2211 = vshrl.u32 %v2210, 7
    %v2212 = vsub.s32 %v2209, %v2211
    %v2213 = vrot.slane %v2206, %v2212
    %v2214 = vcombine.low %v1978, %v1979
    %v2216 = vunpack.c.l.s4 1966171168
    %v2217 = vunpack.c.0.s8 %v2216
    %v2218 = vlaneseq
    %v2219 = vshrl.u32 %v2218, 7
    %v2220 = vsub.s32 %v2217, %v2219
    %v2221 = vrot.slane %v2214, %v2220
    %v2223 = vunpack.c.l.s4 1966171168
    %v2224 = vunpack.c.0.s8 %v2223
    %v2225 = vlaneseq
    %v2226 = vshrl.u32 %v2225, 7
    %v2227 = vsub.s32 %v2224, %v2226
    %v2228 = vrot.slane %v1980, %v2227
    %v2229 = vcombine.low %v2221, %v2228
    %v2231 = vunpack.c.l.s4 1966171168
    %v2232 = vunpack.c.0.s8 %v2231
    %v2233 = vlaneseq
    %v2234 = vshrl.u32 %v2233, 7
    %v2235 = vsub.s32 %v2232, %v2234
    %v2236 = vrot.slane %v2229, %v2235
    %v2237 = vcombine.low %v1981, %v1982
    %v2239 = vunpack.c.l.s4 1966171168
    %v2240 = vunpack.c.0.s8 %v2239
    %v2241 = vlaneseq
    %v2242 = vshrl.u32 %v2241, 7
    %v2243 = vsub.s32 %v2240, %v2242
    %v2244 = vrot.slane %v2237, %v2243
    %v2246 = vunpack.c.l.s4 1966171168
    %v2247 = vunpack.c.0.s8 %v2246
    %v2248 = vlaneseq
    %v2249 = vshrl.u32 %v2248, 7
    %v2250 = vsub.s32 %v2247, %v2249
    %v2251 = vrot.slane %v1983, %v2250
    %v2252 = vcombine.low %v2244, %v2251
    %v2254 = vunpack.c.l.s4 1966171168
    %v2255 = vunpack.c.0.s8 %v2254
    %v2256 = vlaneseq
    %v2257 = vshrl.u32 %v2256, 7
    %v2258 = vsub.s32 %v2255, %v2257
    %v2259 = vrot.slane %v2252, %v2258
    %v2260 = vcombine.low %v1984, %v1985
    %v2262 = vunpack.c.l.s4 1966171168
    %v2263 = vunpack.c.0.s8 %v2262
    %v2264 = vlaneseq
    %v2265 = vshrl.u32 %v2264, 7
    %v2266 = vsub.s32 %v2263, %v2265
    %v2267 = vrot.slane %v2260, %v2266
    %v2269 = vunpack.c.l.s4 1966171168
    %v2270 = vunpack.c.0.s8 %v2269
    %v2271 = vlaneseq
    %v2272 = vshrl.u32 %v2271, 7
    %v2273 = vsub.s32 %v2270, %v2272
    %v2274 = vrot.slane %v1986, %v2273
    %v2275 = vcombine.low %v2267, %v2274
    %v2277 = vunpack.c.l.s4 1966171168
    %v2278 = vunpack.c.0.s8 %v2277
    %v2279 = vlaneseq
    %v2280 = vshrl.u32 %v2279, 7
    %v2281 = vsub.s32 %v2278, %v2280
    %v2282 = vrot.slane %v2275, %v2281
    %v2283 = vcombine.low %v1987, %v1988
    %v2285 = vunpack.c.l.s4 1966171168
    %v2286 = vunpack.c.0.s8 %v2285
    %v2287 = vlaneseq
    %v2288 = vshrl.u32 %v2287, 7
    %v2289 = vsub.s32 %v2286, %v2288
    %v2290 = vrot.slane %v2283, %v2289
    %v2292 = vunpack.c.l.s4 1966171168
    %v2293 = vunpack.c.0.s8 %v2292
    %v2294 = vlaneseq
    %v2295 = vshrl.u32 %v2294, 7
    %v2296 = vsub.s32 %v2293, %v2295
    %v2297 = vrot.slane %v1989, %v2296
    %v2298 = vcombine.low %v2290, %v2297
    %v2300 = vunpack.c.l.s4 1966171168
    %v2301 = vunpack.c.0.s8 %v2300
    %v2302 = vlaneseq
    %v2303 = vshrl.u32 %v2302, 7
    %v2304 = vsub.s32 %v2301, %v2303
    %v2305 = vrot.slane %v2298, %v2304
    %v2306 = vcombine.low %v1990, %v1991
    %v2308 = vunpack.c.l.s4 1966171168
    %v2309 = vunpack.c.0.s8 %v2308
    %v2310 = vlaneseq
    %v2311 = vshrl.u32 %v2310, 7
    %v2312 = vsub.s32 %v2309, %v2311
    %v2313 = vrot.slane %v2306, %v2312
    %v2315 = vunpack.c.l.s4 1966171168
    %v2316 = vunpack.c.0.s8 %v2315
    %v2317 = vlaneseq
    %v2318 = vshrl.u32 %v2317, 7
    %v2319 = vsub.s32 %v2316, %v2318
    %v2320 = vrot.slane %v1992, %v2319
    %v2321 = vcombine.low %v2313, %v2320
    %v2323 = vunpack.c.l.s4 1966171168
    %v2324 = vunpack.c.0.s8 %v2323
    %v2325 = vlaneseq
    %v2326 = vshrl.u32 %v2325, 7
    %v2327 = vsub.s32 %v2324, %v2326
    %v2328 = vrot.slane %v2321, %v2327
    %v2329 = vcombine.low %v1993, %v1994
    %v2331 = vunpack.c.l.s4 1966171168
    %v2332 = vunpack.c.0.s8 %v2331
    %v2333 = vlaneseq
    %v2334 = vshrl.u32 %v2333, 7
    %v2335 = vsub.s32 %v2332, %v2334
    %v2336 = vrot.slane %v2329, %v2335
    %v2338 = vunpack.c.l.s4 1966171168
    %v2339 = vunpack.c.0.s8 %v2338
    %v2340 = vlaneseq
    %v2341 = vshrl.u32 %v2340, 7
    %v2342 = vsub.s32 %v2339, %v2341
    %v2343 = vrot.slane %v1995, %v2342
    %v2344 = vcombine.low %v2336, %v2343
    %v2346 = vunpack.c.l.s4 1966171168
    %v2347 = vunpack.c.0.s8 %v2346
    %v2348 = vlaneseq
    %v2349 = vshrl.u32 %v2348, 7
    %v2350 = vsub.s32 %v2347, %v2349
    %v2351 = vrot.slane %v2344, %v2350
    %v2352 = vcombine.low %v1996, %v1997
    %v2354 = vunpack.c.l.s4 1966171168
    %v2355 = vunpack.c.0.s8 %v2354
    %v2356 = vlaneseq
    %v2357 = vshrl.u32 %v2356, 7
    %v2358 = vsub.s32 %v2355, %v2357
    %v2359 = vrot.slane %v2352, %v2358
    %v2361 = vunpack.c.l.s4 1966171168
    %v2362 = vunpack.c.0.s8 %v2361
    %v2363 = vlaneseq
    %v2364 = vshrl.u32 %v2363, 7
    %v2365 = vsub.s32 %v2362, %v2364
    %v2366 = vrot.slane %v1998, %v2365
    %v2367 = vcombine.low %v2359, %v2366
    %v2369 = vunpack.c.l.s4 1966171168
    %v2370 = vunpack.c.0.s8 %v2369
    %v2371 = vlaneseq
    %v2372 = vshrl.u32 %v2371, 7
    %v2373 = vsub.s32 %v2370, %v2372
    %v2374 = vrot.slane %v2367, %v2373
    %v2375 = vcombine.low %v1999, %v2000
    %v2377 = vunpack.c.l.s4 1966171168
    %v2378 = vunpack.c.0.s8 %v2377
    %v2379 = vlaneseq
    %v2380 = vshrl.u32 %v2379, 7
    %v2381 = vsub.s32 %v2378, %v2380
    %v2382 = vrot.slane %v2375, %v2381
    %v2384 = vunpack.c.l.s4 1966171168
    %v2385 = vunpack.c.0.s8 %v2384
    %v2386 = vlaneseq
    %v2387 = vshrl.u32 %v2386, 7
    %v2388 = vsub.s32 %v2385, %v2387
    %v2389 = vrot.slane %v2001, %v2388
    %v2390 = vcombine.low %v2382, %v2389
    %v2392 = vunpack.c.l.s4 1966171168
    %v2393 = vunpack.c.0.s8 %v2392
    %v2394 = vlaneseq
    %v2395 = vshrl.u32 %v2394, 7
    %v2396 = vsub.s32 %v2393, %v2395
    %v2397 = vrot.slane %v2390, %v2396
    %v2398 = vcombine.low %v2002, %v2003
    %v2400 = vunpack.c.l.s4 1966171168
    %v2401 = vunpack.c.0.s8 %v2400
    %v2402 = vlaneseq
    %v2403 = vshrl.u32 %v2402, 7
    %v2404 = vsub.s32 %v2401, %v2403
    %v2405 = vrot.slane %v2398, %v2404
    %v2407 = vunpack.c.l.s4 1966171168
    %v2408 = vunpack.c.0.s8 %v2407
    %v2409 = vlaneseq
    %v2410 = vshrl.u32 %v2409, 7
    %v2411 = vsub.s32 %v2408, %v2410
    %v2412 = vrot.slane %v2004, %v2411
    %v2413 = vcombine.low %v2405, %v2412
    %v2415 = vunpack.c.l.s4 1966171168
    %v2416 = vunpack.c.0.s8 %v2415
    %v2417 = vlaneseq
    %v2418 = vshrl.u32 %v2417, 7
    %v2419 = vsub.s32 %v2416, %v2418
    %v2420 = vrot.slane %v2413, %v2419
    %v2437 = vlaneseq
    %vm2438 = vcmp.ge.s32.totalorder %v2437, 0
    %vm2439 = vcmp.lt.s32.totalorder %v2437, 384
    %vm2440 = vmand %vm2438, %vm2439
    %2441 = vst.msk [vmem:[%s3] sm:$0x7] %vm2440, %v2075
    %2442 = vst.msk [vmem:[%s3 + $0x3] sm:$0x7] %vm2440, %v2098
    %2443 = vst.msk [vmem:[%s3 + $0x6] sm:$0x7] %vm2440, %v2121
    %2444 = vst.msk [vmem:[%s3 + $0x9] sm:$0x7] %vm2440, %v2144
    %2445 = vst.msk [vmem:[%s3 + $0xc] sm:$0x7] %vm2440, %v2167
    %2446 = vst.msk [vmem:[%s3 + $0xf] sm:$0x7] %vm2440, %v2190
    %2447 = vst.msk [vmem:[%s3 + $0x12] sm:$0x7] %vm2440, %v2213
    %2448 = vst.msk [vmem:[%s3 + $0x15] sm:$0x7] %vm2440, %v2236
    %2449 = vst.msk [vmem:[%s3 + $0x18] sm:$0x7] %vm2440, %v2259
    %2450 = vst.msk [vmem:[%s3 + $0x1b] sm:$0x7] %vm2440, %v2282
    %2451 = vst.msk [vmem:[%s3 + $0x1e] sm:$0x7] %vm2440, %v2305
    %2452 = vst.msk [vmem:[%s3 + $0x21] sm:$0x7] %vm2440, %v2328
    %2453 = vst.msk [vmem:[%s3 + $0x24] sm:$0x7] %vm2440, %v2351
    %2454 = vst.msk [vmem:[%s3 + $0x27] sm:$0x7] %vm2440, %v2374
    %2455 = vst.msk [vmem:[%s3 + $0x2a] sm:$0x7] %vm2440, %v2397
    %2456 = vst.msk [vmem:[%s3 + $0x2d] sm:$0x7] %vm2440, %v2420
    // Predicated region
    $region18: #{model_forward.1} parent=1 // pred_check
      _
    $region19: #{model_forward.1} parent=1 // pred_check_branch
      %2458 = sbr.rel (0) target = $region21
    $region20: #{model_forward.1} parent=1 // pred_region
      _
    $region21: #{model_forward.1} parent=1 // pred_fallthru
      _
    // Predicated region
    $region22: #{model_forward.1} parent=1 // pred_check
      _
    $region23: #{model_forward.1} parent=1 // pred_check_branch
      %2460 = sbr.rel (0) target = $region25
    $region24: #{model_forward.1} parent=1 // pred_region
      _
    $region25: #{model_forward.1} parent=1 // pred_fallthru
      _
    %2461 = vsyncpa [#allocation4], 1

</llo_original>
